<compile_context>
chip_gen: v5e
topology: v5e:2x2
jax: 0.10.0
libtpu: 0.0.40
codegen_flags: <defaults>
</compile_context>

<pallas_src>
import functools

import jax
import jax.numpy as jnp
from jax import lax
from jax.experimental import pallas as pl
from jax.experimental.pallas import tpu as pltpu


def _round_up(x, m):
    return (x + m - 1) // m * m


def _upconv_kernel(x_ref, xh_ref, w_ref, b_ref, o_ref, xbuf_ref, acc_ref, *,
                   ksize_h, ksize_w, stride, tile_oh, cin, wo_buf):
    """One (batch, output-row-tile) step of the reflection-padded strided conv.

    x_ref   : (1, B, S*Cin, Wm)   main padded-input rows for this output row tile
    xh_ref  : (1, HF, S*Cin, Wm)  halo rows immediately below the main rows
    w_ref   : (KH, KW, Cout, Cin) weights (taps leading, channels on the tiled dims)
    b_ref   : (1, Cout, 1)        float32 bias
    o_ref   : (1, TILE_OH, Cout, Wo_buf) output block (lane-dense last dim)
    xbuf_ref: (B + HF, S*Cin, Wm) VMEM scratch stitching main + halo rows
    acc_ref : (TILE_OH, Cout, Wo_buf) float32 VMEM scratch accumulator
    """
    blk_h = stride * tile_oh
    hf = xh_ref.shape[1]
    cout = acc_ref.shape[1]

    # Stitch main + halo rows into one contiguous buffer (leading-dim copies only).
    xbuf_ref[0:blk_h] = x_ref[0]
    xbuf_ref[blk_h:blk_h + hf] = xh_ref[0]

    acc_ref[...] = jnp.zeros_like(acc_ref)
    for dh in range(ksize_h):                              # static unroll over taps
        rows_dense = xbuf_ref[dh:dh + blk_h]               # (S*TILE_OH, S*Cin, Wm)
        if stride == 1:
            rows = rows_dense
        else:
            # Row-stride subsampling: split the (free) leading dim, keep phase 0.
            rows = rows_dense.reshape(
                tile_oh, stride, rows_dense.shape[1], rows_dense.shape[2])[:, 0]
        for dw in range(ksize_w):
            p, j = dw % stride, dw // stride
            # Padded-input column stride*ow + dw lives in width-phase p at index ow + j.
            xt = rows[:, p * cin:(p + 1) * cin, j:j + wo_buf]   # (TILE_OH, Cin, Wo_buf)
            wt = w_ref[dh, dw, :, :]                            # (Cout, Cin)
            wt_b = jnp.broadcast_to(wt, (tile_oh, cout, cin))
            acc_ref[...] += jnp.einsum(
                "toc,tcw->tow", wt_b, xt, preferred_element_type=jnp.float32)

    o_ref[0] = (acc_ref[...] + b_ref[...]).astype(o_ref.dtype)


@functools.partial(jax.jit, static_argnames=("stride", "upsample", "tile_oh"))
def upsample_conv_layer_forward(x_nchw, weight, bias, *, stride=1, upsample=None,
                                tile_oh=None):
    """Forward pass of UpsampleConvLayer: nearest Upsample -> ReflectionPad2d -> Conv2d."""
    s = int(stride)
    if upsample is not None and int(upsample) != 1:
        # TODO(synk): only integer nearest-neighbour upsample scale factors are supported.
        u = int(upsample)
        x_nchw = jnp.repeat(jnp.repeat(x_nchw, u, axis=2), u, axis=3)

    n, cin, h, w = x_nchw.shape
    cout, cin_w, ksh, ksw = weight.shape
    assert cin == cin_w, (cin, cin_w)
    pad = ksh // 2                                     # int(floor(kernel_size / 2))

    # NCHW -> N H C W (W on the lane axis), then reflection-pad H and W.
    xt = jnp.transpose(x_nchw, (0, 2, 1, 3))
    xt = jnp.pad(xt, ((0, 0), (pad, pad), (0, 0), (pad, pad)), mode="reflect")
    hp, wp = h + 2 * pad, w + 2 * pad
    ho = (hp - ksh) // s + 1
    wo = (wp - ksw) // s + 1

    # ---- Output-row tiling (grid axis 1) ----
    if tile_oh is None:
        tile_oh = 16 if ho >= 64 else 8
    while s * tile_oh < ksh - 1:                       # halo must fit below one tile
        tile_oh *= 2
    num_t = -(-ho // tile_oh)
    ho_pad = num_t * tile_oh
    blk_h = s * tile_oh                                # padded-input rows per main block
    need_halo = max(ksh - 1, 1)
    hf = next(d for d in range(1, blk_h + 1) if blk_h % d == 0 and d >= need_halo)
    halo_bpt = blk_h // hf                             # halo block-index step per tile

    # ---- Lane-dense output width + width phase decomposition for the stride ----
    wo_buf = _round_up(wo, 128)
    jmax = (ksw - 1) // s
    wm = wo_buf + jmax                                 # per-phase width seen by the kernel
    w_target = s * wm
    if w_target >= wp:
        xt = jnp.pad(xt, ((0, 0), (0, 0), (0, 0), (0, w_target - wp)))
    else:
        xt = xt[:, :, :, :w_target]                    # tail never read by valid outputs
    hin = (num_t + 1) * blk_h                          # rows incl. zero pad for last halo
    xt = jnp.pad(xt, ((0, 0), (0, hin - hp), (0, 0), (0, 0)))
    # Deinterleave width phases and fold them into the channel dim:
    # (N, Hin, Cin, S*Wm) -> (N, Hin, S*Cin, Wm), channel index = phase*Cin + ci.
    xt = xt.reshape(n, hin, cin, wm, s)
    xt = jnp.transpose(xt, (0, 1, 4, 2, 3)).reshape(n, hin, s * cin, wm)

    w_t = jnp.transpose(weight, (2, 3, 0, 1))          # (KH, KW, Cout, Cin)
    b_t = bias.reshape(1, cout, 1).astype(jnp.float32)

    kernel = functools.partial(
        _upconv_kernel, ksize_h=ksh, ksize_w=ksw, stride=s,
        tile_oh=tile_oh, cin=cin, wo_buf=wo_buf)

    out_buf = pl.pallas_call(
        kernel,
        out_shape=jax.ShapeDtypeStruct((n, ho_pad, cout, wo_buf), x_nchw.dtype),
        grid_spec=pltpu.PrefetchScalarGridSpec(
            num_scalar_prefetch=0,
            grid=(n, num_t),
            in_specs=[
                # Main rows for this output-row tile.
                pl.BlockSpec((1, blk_h, s * cin, wm), lambda b, i: (b, i, 0, 0)),
                # Small halo block just below the main rows (same array, 2nd spec).
                pl.BlockSpec((1, hf, s * cin, wm),
                             lambda b, i: (b, (i + 1) * halo_bpt, 0, 0)),
                # Weights / bias: constant index -> stay resident in VMEM.
                pl.BlockSpec((ksh, ksw, cout, cin), lambda b, i: (0, 0, 0, 0)),
                pl.BlockSpec((1, cout, 1), lambda b, i: (0, 0, 0)),
            ],
            out_specs=pl.BlockSpec((1, tile_oh, cout, wo_buf),
                                   lambda b, i: (b, i, 0, 0)),
            scratch_shapes=[
                pltpu.VMEM((blk_h + hf, s * cin, wm), xt.dtype),
                pltpu.VMEM((tile_oh, cout, wo_buf), jnp.float32),
            ],
        ),
        compiler_params=pltpu.CompilerParams(
            dimension_semantics=("parallel", "parallel"),
            vmem_limit_bytes=48 * 1024 * 1024,
        ),
    )(xt, xt, w_t, b_t)

    out = out_buf[:, :ho, :, :wo]                      # drop row / lane padding
    return jnp.transpose(out, (0, 2, 1, 3))            # back to NCHW


def upsample_conv_layer_reference(x_nchw, weight, bias, *, stride=1, upsample=None):
    """Pure-JAX reference (Upsample + ReflectionPad2d + Conv2d) for correctness checks."""
    if upsample is not None and int(upsample) != 1:
        u = int(upsample)
        x_nchw = jnp.repeat(jnp.repeat(x_nchw, u, axis=2), u, axis=3)
    pad = weight.shape[2] // 2
    xp = jnp.pad(x_nchw, ((0, 0), (0, 0), (pad, pad), (pad, pad)), mode="reflect")
    out = lax.conv_general_dilated(
        xp, weight, window_strides=(stride, stride), padding="VALID",
        dimension_numbers=("NCHW", "OIHW", "NCHW"))
    return out + bias.reshape(1, -1, 1, 1)


if __name__ == "__main__":
    key = jax.random.PRNGKey(0)
    k_x, k_w, k_b = jax.random.split(key, 3)

    # UpsampleConvLayer(in_channels=4, out_channels=8, kernel_size=3, stride=1, upsample=2)
    N, Cin, H, W = 2, 4, 16, 16
    Cout, K = 8, 3

    x = jax.random.normal(k_x, (N, Cin, H, W), dtype=jnp.float32)
    # Deterministic Conv2d-style init (uniform in +/- 1/sqrt(fan_in)).
    fan_in = Cin * K * K
    bound = fan_in ** -0.5
    weight = jax.random.uniform(k_w, (Cout, Cin, K, K), jnp.float32, -bound, bound)
    bias = jax.random.uniform(k_b, (Cout,), jnp.float32, -bound, bound)

    configs = [
        dict(stride=1, upsample=2),    # canonical decoder usage of UpsampleConvLayer
        dict(stride=1, upsample=None),
        dict(stride=2, upsample=None),  # exercises the in-kernel stride path
    ]
    for cfg in configs:
        out = jax.block_until_ready(
            upsample_conv_layer_forward(x, weight, bias, **cfg))
        ref = upsample_conv_layer_reference(x, weight, bias, **cfg)
        assert out.shape == ref.shape, (cfg, out.shape, ref.shape)
        assert jnp.allclose(out, ref, atol=1e-3, rtol=1e-3), (
            cfg, float(jnp.max(jnp.abs(out - ref))))

    print("KERNEL_OK")
</pallas_src>

<mosaic_0001>
module attributes {stable_mosaic.version = 11 : i64} {
  func.func @_upconv_kernel(%arg0: i32, %arg1: i32, %arg2: memref<1x8x4x130xf32, #tpu.memory_space<vmem>>, %arg3: memref<1x2x4x130xf32, #tpu.memory_space<vmem>>, %arg4: memref<3x3x8x4xf32, #tpu.memory_space<vmem>>, %arg5: memref<1x8x1xf32, #tpu.memory_space<vmem>>, %arg6: memref<1x8x8x128xf32, #tpu.memory_space<vmem>>, %arg7: memref<10x4x130xf32, #tpu.memory_space<vmem>>, %arg8: memref<8x8x128xf32, #tpu.memory_space<vmem>>) attributes {dimension_semantics = [#tpu.dimension_semantics<parallel>, #tpu.dimension_semantics<parallel>], iteration_bounds = array<i64: 2, 4>, scalar_prefetch = 0 : i64, scratch_operands = 2 : i64, tpu.core_type = #tpu.core_type<tc>, window_params = [{transform_indices = @transform_0, window_bounds = array<i64: 1, 8, 4, 130>}, {transform_indices = @transform_1, window_bounds = array<i64: 1, 2, 4, 130>}, {pipeline_mode = #tpu.pipeline_mode<synchronous>, transform_indices = @transform_2, window_bounds = array<i64: 3, 3, 8, 4>}, {pipeline_mode = #tpu.pipeline_mode<synchronous>, transform_indices = @transform_3, window_bounds = array<i64: 1, 8, 1>}, {transform_indices = @transform_4, window_bounds = array<i64: 1, 8, 8, 128>}]} {
    %c0 = arith.constant 0 : index
    %c0_0 = arith.constant 0 : index
    %c0_1 = arith.constant 0 : index
    %c0_2 = arith.constant 0 : index
    %0 = vector.load %arg2[%c0, %c0_0, %c0_1, %c0_2] : memref<1x8x4x130xf32, #tpu.memory_space<vmem>>, vector<1x8x4x130xf32>
    %1 = vector.shape_cast %0 : vector<1x8x4x130xf32> to vector<8x4x130xf32>
    %c0_3 = arith.constant 0 : index
    %c0_4 = arith.constant 0 : index
    %c0_5 = arith.constant 0 : index
    %2 = vector.load %arg7[%c0_3, %c0_4, %c0_5] : memref<10x4x130xf32, #tpu.memory_space<vmem>>, vector<8x4x130xf32>
    tpu.vector_store %arg7[%c0_3, %c0_4, %c0_5], %1 {strides = array<i32>} : memref<10x4x130xf32, #tpu.memory_space<vmem>>, vector<8x4x130xf32>,
    %c0_6 = arith.constant 0 : index
    %c0_7 = arith.constant 0 : index
    %c0_8 = arith.constant 0 : index
    %c0_9 = arith.constant 0 : index
    %3 = vector.load %arg3[%c0_6, %c0_7, %c0_8, %c0_9] : memref<1x2x4x130xf32, #tpu.memory_space<vmem>>, vector<1x2x4x130xf32>
    %4 = vector.shape_cast %3 : vector<1x2x4x130xf32> to vector<2x4x130xf32>
    %c8 = arith.constant 8 : index
    %c0_10 = arith.constant 0 : index
    %c0_11 = arith.constant 0 : index
    %5 = vector.load %arg7[%c8, %c0_10, %c0_11] : memref<10x4x130xf32, #tpu.memory_space<vmem>>, vector<2x4x130xf32>
    tpu.vector_store %arg7[%c8, %c0_10, %c0_11], %4 {strides = array<i32>} : memref<10x4x130xf32, #tpu.memory_space<vmem>>, vector<2x4x130xf32>,
    %cst = arith.constant 0.000000e+00 : f32
    %6 = vector.broadcast %cst : f32 to vector<8x8x128xf32>
    %c0_12 = arith.constant 0 : index
    %c0_13 = arith.constant 0 : index
    %c0_14 = arith.constant 0 : index
    %7 = vector.load %arg8[%c0_12, %c0_13, %c0_14] : memref<8x8x128xf32, #tpu.memory_space<vmem>>, vector<8x8x128xf32>
    tpu.vector_store %arg8[%c0_12, %c0_13, %c0_14], %6 {strides = array<i32>} : memref<8x8x128xf32, #tpu.memory_space<vmem>>, vector<8x8x128xf32>,
    %c0_15 = arith.constant 0 : index
    %c0_16 = arith.constant 0 : index
    %c0_17 = arith.constant 0 : index
    %8 = vector.load %arg7[%c0_15, %c0_16, %c0_17] : memref<10x4x130xf32, #tpu.memory_space<vmem>>, vector<8x4x130xf32>
    %9 = vector.extract_strided_slice %8 {offsets = [0, 0, 0], sizes = [8, 4, 128], strides = [1, 1, 1]} : vector<8x4x130xf32> to vector<8x4x128xf32>
    %c0_18 = arith.constant 0 : index
    %c0_19 = arith.constant 0 : index
    %c0_20 = arith.constant 0 : index
    %c0_21 = arith.constant 0 : index
    %10 = vector.load %arg4[%c0_18, %c0_19, %c0_20, %c0_21] : memref<3x3x8x4xf32, #tpu.memory_space<vmem>>, vector<1x1x8x4xf32>
    %11 = vector.shape_cast %10 : vector<1x1x8x4xf32> to vector<8x4xf32>
    %12 = vector.shape_cast %11 : vector<8x4xf32> to vector<1x8x4xf32>
    %13 = vector.broadcast %12 : vector<1x8x4xf32> to vector<8x8x4xf32>
    %c0_22 = arith.constant 0 : index
    %c0_23 = arith.constant 0 : index
    %c0_24 = arith.constant 0 : index
    %14 = vector.load %arg8[%c0_22, %c0_23, %c0_24] : memref<8x8x128xf32, #tpu.memory_space<vmem>>, vector<8x8x128xf32>
    "tpu.trace_start"() <{level = 10 : i32, message = "toc,tcw->tow"}> : () -> ()
    %cst_25 = arith.constant dense<0.000000e+00> : vector<8x8x128xf32>
    %15 = tpu.matmul %13, %9, %cst_25 {dimension_numbers = #tpu.dot_dimension_numbers<[2], [1], [1], [2], [0, 0, 0, 1, 1, 2], [0], [0]>} : vector<8x8x4xf32>, vector<8x4x128xf32>, vector<8x8x128xf32> -> vector<8x8x128xf32>
    "tpu.trace_stop"() : () -> ()
    %16 = arith.addf %14, %15 : vector<8x8x128xf32>
    %c0_26 = arith.constant 0 : index
    %c0_27 = arith.constant 0 : index
    %c0_28 = arith.constant 0 : index
    %17 = vector.load %arg8[%c0_26, %c0_27, %c0_28] : memref<8x8x128xf32, #tpu.memory_space<vmem>>, vector<8x8x128xf32>
    tpu.vector_store %arg8[%c0_26, %c0_27, %c0_28], %16 {strides = array<i32>} : memref<8x8x128xf32, #tpu.memory_space<vmem>>, vector<8x8x128xf32>,
    %18 = vector.extract_strided_slice %8 {offsets = [0, 0, 1], sizes = [8, 4, 128], strides = [1, 1, 1]} : vector<8x4x130xf32> to vector<8x4x128xf32>
    %c0_29 = arith.constant 0 : index
    %c1 = arith.constant 1 : index
    %c0_30 = arith.constant 0 : index
    %c0_31 = arith.constant 0 : index
    %19 = vector.load %arg4[%c0_29, %c1, %c0_30, %c0_31] : memref<3x3x8x4xf32, #tpu.memory_space<vmem>>, vector<1x1x8x4xf32>
    %20 = vector.shape_cast %19 : vector<1x1x8x4xf32> to vector<8x4xf32>
    %21 = vector.shape_cast %20 : vector<8x4xf32> to vector<1x8x4xf32>
    %22 = vector.broadcast %21 : vector<1x8x4xf32> to vector<8x8x4xf32>
    %c0_32 = arith.constant 0 : index
    %c0_33 = arith.constant 0 : index
    %c0_34 = arith.constant 0 : index
    %23 = vector.load %arg8[%c0_32, %c0_33, %c0_34] : memref<8x8x128xf32, #tpu.memory_space<vmem>>, vector<8x8x128xf32>
    "tpu.trace_start"() <{level = 10 : i32, message = "toc,tcw->tow"}> : () -> ()
    %cst_35 = arith.constant dense<0.000000e+00> : vector<8x8x128xf32>
    %24 = tpu.matmul %22, %18, %cst_35 {dimension_numbers = #tpu.dot_dimension_numbers<[2], [1], [1], [2], [0, 0, 0, 1, 1, 2], [0], [0]>} : vector<8x8x4xf32>, vector<8x4x128xf32>, vector<8x8x128xf32> -> vector<8x8x128xf32>
    "tpu.trace_stop"() : () -> ()
    %25 = arith.addf %23, %24 : vector<8x8x128xf32>
    %c0_36 = arith.constant 0 : index
    %c0_37 = arith.constant 0 : index
    %c0_38 = arith.constant 0 : index
    %26 = vector.load %arg8[%c0_36, %c0_37, %c0_38] : memref<8x8x128xf32, #tpu.memory_space<vmem>>, vector<8x8x128xf32>
    tpu.vector_store %arg8[%c0_36, %c0_37, %c0_38], %25 {strides = array<i32>} : memref<8x8x128xf32, #tpu.memory_space<vmem>>, vector<8x8x128xf32>,
    %27 = vector.extract_strided_slice %8 {offsets = [0, 0, 2], sizes = [8, 4, 128], strides = [1, 1, 1]} : vector<8x4x130xf32> to vector<8x4x128xf32>
    %c0_39 = arith.constant 0 : index
    %c2 = arith.constant 2 : index
    %c0_40 = arith.constant 0 : index
    %c0_41 = arith.constant 0 : index
    %28 = vector.load %arg4[%c0_39, %c2, %c0_40, %c0_41] : memref<3x3x8x4xf32, #tpu.memory_space<vmem>>, vector<1x1x8x4xf32>
    %29 = vector.shape_cast %28 : vector<1x1x8x4xf32> to vector<8x4xf32>
    %30 = vector.shape_cast %29 : vector<8x4xf32> to vector<1x8x4xf32>
    %31 = vector.broadcast %30 : vector<1x8x4xf32> to vector<8x8x4xf32>
    %c0_42 = arith.constant 0 : index
    %c0_43 = arith.constant 0 : index
    %c0_44 = arith.constant 0 : index
    %32 = vector.load %arg8[%c0_42, %c0_43, %c0_44] : memref<8x8x128xf32, #tpu.memory_space<vmem>>, vector<8x8x128xf32>
    "tpu.trace_start"() <{level = 10 : i32, message = "toc,tcw->tow"}> : () -> ()
    %cst_45 = arith.constant dense<0.000000e+00> : vector<8x8x128xf32>
    %33 = tpu.matmul %31, %27, %cst_45 {dimension_numbers = #tpu.dot_dimension_numbers<[2], [1], [1], [2], [0, 0, 0, 1, 1, 2], [0], [0]>} : vector<8x8x4xf32>, vector<8x4x128xf32>, vector<8x8x128xf32> -> vector<8x8x128xf32>
    "tpu.trace_stop"() : () -> ()
    %34 = arith.addf %32, %33 : vector<8x8x128xf32>
    %c0_46 = arith.constant 0 : index
    %c0_47 = arith.constant 0 : index
    %c0_48 = arith.constant 0 : index
    %35 = vector.load %arg8[%c0_46, %c0_47, %c0_48] : memref<8x8x128xf32, #tpu.memory_space<vmem>>, vector<8x8x128xf32>
    tpu.vector_store %arg8[%c0_46, %c0_47, %c0_48], %34 {strides = array<i32>} : memref<8x8x128xf32, #tpu.memory_space<vmem>>, vector<8x8x128xf32>,
    %c1_49 = arith.constant 1 : index
    %c0_50 = arith.constant 0 : index
    %c0_51 = arith.constant 0 : index
    %36 = vector.load %arg7[%c1_49, %c0_50, %c0_51] : memref<10x4x130xf32, #tpu.memory_space<vmem>>, vector<8x4x130xf32>
    %37 = vector.extract_strided_slice %36 {offsets = [0, 0, 0], sizes = [8, 4, 128], strides = [1, 1, 1]} : vector<8x4x130xf32> to vector<8x4x128xf32>
    %c1_52 = arith.constant 1 : index
    %c0_53 = arith.constant 0 : index
    %c0_54 = arith.constant 0 : index
    %c0_55 = arith.constant 0 : index
    %38 = vector.load %arg4[%c1_52, %c0_53, %c0_54, %c0_55] : memref<3x3x8x4xf32, #tpu.memory_space<vmem>>, vector<1x1x8x4xf32>
    %39 = vector.shape_cast %38 : vector<1x1x8x4xf32> to vector<8x4xf32>
    %40 = vector.shape_cast %39 : vector<8x4xf32> to vector<1x8x4xf32>
    %41 = vector.broadcast %40 : vector<1x8x4xf32> to vector<8x8x4xf32>
    %c0_56 = arith.constant 0 : index
    %c0_57 = arith.constant 0 : index
    %c0_58 = arith.constant 0 : index
    %42 = vector.load %arg8[%c0_56, %c0_57, %c0_58] : memref<8x8x128xf32, #tpu.memory_space<vmem>>, vector<8x8x128xf32>
    "tpu.trace_start"() <{level = 10 : i32, message = "toc,tcw->tow"}> : () -> ()
    %cst_59 = arith.constant dense<0.000000e+00> : vector<8x8x128xf32>
    %43 = tpu.matmul %41, %37, %cst_59 {dimension_numbers = #tpu.dot_dimension_numbers<[2], [1], [1], [2], [0, 0, 0, 1, 1, 2], [0], [0]>} : vector<8x8x4xf32>, vector<8x4x128xf32>, vector<8x8x128xf32> -> vector<8x8x128xf32>
    "tpu.trace_stop"() : () -> ()
    %44 = arith.addf %42, %43 : vector<8x8x128xf32>
    %c0_60 = arith.constant 0 : index
    %c0_61 = arith.constant 0 : index
    %c0_62 = arith.constant 0 : index
    %45 = vector.load %arg8[%c0_60, %c0_61, %c0_62] : memref<8x8x128xf32, #tpu.memory_space<vmem>>, vector<8x8x128xf32>
    tpu.vector_store %arg8[%c0_60, %c0_61, %c0_62], %44 {strides = array<i32>} : memref<8x8x128xf32, #tpu.memory_space<vmem>>, vector<8x8x128xf32>,
    %46 = vector.extract_strided_slice %36 {offsets = [0, 0, 1], sizes = [8, 4, 128], strides = [1, 1, 1]} : vector<8x4x130xf32> to vector<8x4x128xf32>
    %c1_63 = arith.constant 1 : index
    %c1_64 = arith.constant 1 : index
    %c0_65 = arith.constant 0 : index
    %c0_66 = arith.constant 0 : index
    %47 = vector.load %arg4[%c1_63, %c1_64, %c0_65, %c0_66] : memref<3x3x8x4xf32, #tpu.memory_space<vmem>>, vector<1x1x8x4xf32>
    %48 = vector.shape_cast %47 : vector<1x1x8x4xf32> to vector<8x4xf32>
    %49 = vector.shape_cast %48 : vector<8x4xf32> to vector<1x8x4xf32>
    %50 = vector.broadcast %49 : vector<1x8x4xf32> to vector<8x8x4xf32>
    %c0_67 = arith.constant 0 : index
    %c0_68 = arith.constant 0 : index
    %c0_69 = arith.constant 0 : index
    %51 = vector.load %arg8[%c0_67, %c0_68, %c0_69] : memref<8x8x128xf32, #tpu.memory_space<vmem>>, vector<8x8x128xf32>
    "tpu.trace_start"() <{level = 10 : i32, message = "toc,tcw->tow"}> : () -> ()
    %cst_70 = arith.constant dense<0.000000e+00> : vector<8x8x128xf32>
    %52 = tpu.matmul %50, %46, %cst_70 {dimension_numbers = #tpu.dot_dimension_numbers<[2], [1], [1], [2], [0, 0, 0, 1, 1, 2], [0], [0]>} : vector<8x8x4xf32>, vector<8x4x128xf32>, vector<8x8x128xf32> -> vector<8x8x128xf32>
    "tpu.trace_stop"() : () -> ()
    %53 = arith.addf %51, %52 : vector<8x8x128xf32>
    %c0_71 = arith.constant 0 : index
    %c0_72 = arith.constant 0 : index
    %c0_73 = arith.constant 0 : index
    %54 = vector.load %arg8[%c0_71, %c0_72, %c0_73] : memref<8x8x128xf32, #tpu.memory_space<vmem>>, vector<8x8x128xf32>
    tpu.vector_store %arg8[%c0_71, %c0_72, %c0_73], %53 {strides = array<i32>} : memref<8x8x128xf32, #tpu.memory_space<vmem>>, vector<8x8x128xf32>,
    %55 = vector.extract_strided_slice %36 {offsets = [0, 0, 2], sizes = [8, 4, 128], strides = [1, 1, 1]} : vector<8x4x130xf32> to vector<8x4x128xf32>
    %c1_74 = arith.constant 1 : index
    %c2_75 = arith.constant 2 : index
    %c0_76 = arith.constant 0 : index
    %c0_77 = arith.constant 0 : index
    %56 = vector.load %arg4[%c1_74, %c2_75, %c0_76, %c0_77] : memref<3x3x8x4xf32, #tpu.memory_space<vmem>>, vector<1x1x8x4xf32>
    %57 = vector.shape_cast %56 : vector<1x1x8x4xf32> to vector<8x4xf32>
    %58 = vector.shape_cast %57 : vector<8x4xf32> to vector<1x8x4xf32>
    %59 = vector.broadcast %58 : vector<1x8x4xf32> to vector<8x8x4xf32>
    %c0_78 = arith.constant 0 : index
    %c0_79 = arith.constant 0 : index
    %c0_80 = arith.constant 0 : index
    %60 = vector.load %arg8[%c0_78, %c0_79, %c0_80] : memref<8x8x128xf32, #tpu.memory_space<vmem>>, vector<8x8x128xf32>
    "tpu.trace_start"() <{level = 10 : i32, message = "toc,tcw->tow"}> : () -> ()
    %cst_81 = arith.constant dense<0.000000e+00> : vector<8x8x128xf32>
    %61 = tpu.matmul %59, %55, %cst_81 {dimension_numbers = #tpu.dot_dimension_numbers<[2], [1], [1], [2], [0, 0, 0, 1, 1, 2], [0], [0]>} : vector<8x8x4xf32>, vector<8x4x128xf32>, vector<8x8x128xf32> -> vector<8x8x128xf32>
    "tpu.trace_stop"() : () -> ()
    %62 = arith.addf %60, %61 : vector<8x8x128xf32>
    %c0_82 = arith.constant 0 : index
    %c0_83 = arith.constant 0 : index
    %c0_84 = arith.constant 0 : index
    %63 = vector.load %arg8[%c0_82, %c0_83, %c0_84] : memref<8x8x128xf32, #tpu.memory_space<vmem>>, vector<8x8x128xf32>
    tpu.vector_store %arg8[%c0_82, %c0_83, %c0_84], %62 {strides = array<i32>} : memref<8x8x128xf32, #tpu.memory_space<vmem>>, vector<8x8x128xf32>,
    %c2_85 = arith.constant 2 : index
    %c0_86 = arith.constant 0 : index
    %c0_87 = arith.constant 0 : index
    %64 = vector.load %arg7[%c2_85, %c0_86, %c0_87] : memref<10x4x130xf32, #tpu.memory_space<vmem>>, vector<8x4x130xf32>
    %65 = vector.extract_strided_slice %64 {offsets = [0, 0, 0], sizes = [8, 4, 128], strides = [1, 1, 1]} : vector<8x4x130xf32> to vector<8x4x128xf32>
    %c2_88 = arith.constant 2 : index
    %c0_89 = arith.constant 0 : index
    %c0_90 = arith.constant 0 : index
    %c0_91 = arith.constant 0 : index
    %66 = vector.load %arg4[%c2_88, %c0_89, %c0_90, %c0_91] : memref<3x3x8x4xf32, #tpu.memory_space<vmem>>, vector<1x1x8x4xf32>
    %67 = vector.shape_cast %66 : vector<1x1x8x4xf32> to vector<8x4xf32>
    %68 = vector.shape_cast %67 : vector<8x4xf32> to vector<1x8x4xf32>
    %69 = vector.broadcast %68 : vector<1x8x4xf32> to vector<8x8x4xf32>
    %c0_92 = arith.constant 0 : index
    %c0_93 = arith.constant 0 : index
    %c0_94 = arith.constant 0 : index
    %70 = vector.load %arg8[%c0_92, %c0_93, %c0_94] : memref<8x8x128xf32, #tpu.memory_space<vmem>>, vector<8x8x128xf32>
    "tpu.trace_start"() <{level = 10 : i32, message = "toc,tcw->tow"}> : () -> ()
    %cst_95 = arith.constant dense<0.000000e+00> : vector<8x8x128xf32>
    %71 = tpu.matmul %69, %65, %cst_95 {dimension_numbers = #tpu.dot_dimension_numbers<[2], [1], [1], [2], [0, 0, 0, 1, 1, 2], [0], [0]>} : vector<8x8x4xf32>, vector<8x4x128xf32>, vector<8x8x128xf32> -> vector<8x8x128xf32>
    "tpu.trace_stop"() : () -> ()
    %72 = arith.addf %70, %71 : vector<8x8x128xf32>
    %c0_96 = arith.constant 0 : index
    %c0_97 = arith.constant 0 : index
    %c0_98 = arith.constant 0 : index
    %73 = vector.load %arg8[%c0_96, %c0_97, %c0_98] : memref<8x8x128xf32, #tpu.memory_space<vmem>>, vector<8x8x128xf32>
    tpu.vector_store %arg8[%c0_96, %c0_97, %c0_98], %72 {strides = array<i32>} : memref<8x8x128xf32, #tpu.memory_space<vmem>>, vector<8x8x128xf32>,
    %74 = vector.extract_strided_slice %64 {offsets = [0, 0, 1], sizes = [8, 4, 128], strides = [1, 1, 1]} : vector<8x4x130xf32> to vector<8x4x128xf32>
    %c2_99 = arith.constant 2 : index
    %c1_100 = arith.constant 1 : index
    %c0_101 = arith.constant 0 : index
    %c0_102 = arith.constant 0 : index
    %75 = vector.load %arg4[%c2_99, %c1_100, %c0_101, %c0_102] : memref<3x3x8x4xf32, #tpu.memory_space<vmem>>, vector<1x1x8x4xf32>
    %76 = vector.shape_cast %75 : vector<1x1x8x4xf32> to vector<8x4xf32>
    %77 = vector.shape_cast %76 : vector<8x4xf32> to vector<1x8x4xf32>
    %78 = vector.broadcast %77 : vector<1x8x4xf32> to vector<8x8x4xf32>
    %c0_103 = arith.constant 0 : index
    %c0_104 = arith.constant 0 : index
    %c0_105 = arith.constant 0 : index
    %79 = vector.load %arg8[%c0_103, %c0_104, %c0_105] : memref<8x8x128xf32, #tpu.memory_space<vmem>>, vector<8x8x128xf32>
    "tpu.trace_start"() <{level = 10 : i32, message = "toc,tcw->tow"}> : () -> ()
    %cst_106 = arith.constant dense<0.000000e+00> : vector<8x8x128xf32>
    %80 = tpu.matmul %78, %74, %cst_106 {dimension_numbers = #tpu.dot_dimension_numbers<[2], [1], [1], [2], [0, 0, 0, 1, 1, 2], [0], [0]>} : vector<8x8x4xf32>, vector<8x4x128xf32>, vector<8x8x128xf32> -> vector<8x8x128xf32>
    "tpu.trace_stop"() : () -> ()
    %81 = arith.addf %79, %80 : vector<8x8x128xf32>
    %c0_107 = arith.constant 0 : index
    %c0_108 = arith.constant 0 : index
    %c0_109 = arith.constant 0 : index
    %82 = vector.load %arg8[%c0_107, %c0_108, %c0_109] : memref<8x8x128xf32, #tpu.memory_space<vmem>>, vector<8x8x128xf32>
    tpu.vector_store %arg8[%c0_107, %c0_108, %c0_109], %81 {strides = array<i32>} : memref<8x8x128xf32, #tpu.memory_space<vmem>>, vector<8x8x128xf32>,
    %83 = vector.extract_strided_slice %64 {offsets = [0, 0, 2], sizes = [8, 4, 128], strides = [1, 1, 1]} : vector<8x4x130xf32> to vector<8x4x128xf32>
    %c2_110 = arith.constant 2 : index
    %c2_111 = arith.constant 2 : index
    %c0_112 = arith.constant 0 : index
    %c0_113 = arith.constant 0 : index
    %84 = vector.load %arg4[%c2_110, %c2_111, %c0_112, %c0_113] : memref<3x3x8x4xf32, #tpu.memory_space<vmem>>, vector<1x1x8x4xf32>
    %85 = vector.shape_cast %84 : vector<1x1x8x4xf32> to vector<8x4xf32>
    %86 = vector.shape_cast %85 : vector<8x4xf32> to vector<1x8x4xf32>
    %87 = vector.broadcast %86 : vector<1x8x4xf32> to vector<8x8x4xf32>
    %c0_114 = arith.constant 0 : index
    %c0_115 = arith.constant 0 : index
    %c0_116 = arith.constant 0 : index
    %88 = vector.load %arg8[%c0_114, %c0_115, %c0_116] : memref<8x8x128xf32, #tpu.memory_space<vmem>>, vector<8x8x128xf32>
    "tpu.trace_start"() <{level = 10 : i32, message = "toc,tcw->tow"}> : () -> ()
    %cst_117 = arith.constant dense<0.000000e+00> : vector<8x8x128xf32>
    %89 = tpu.matmul %87, %83, %cst_117 {dimension_numbers = #tpu.dot_dimension_numbers<[2], [1], [1], [2], [0, 0, 0, 1, 1, 2], [0], [0]>} : vector<8x8x4xf32>, vector<8x4x128xf32>, vector<8x8x128xf32> -> vector<8x8x128xf32>
    "tpu.trace_stop"() : () -> ()
    %90 = arith.addf %88, %89 : vector<8x8x128xf32>
    %c0_118 = arith.constant 0 : index
    %c0_119 = arith.constant 0 : index
    %c0_120 = arith.constant 0 : index
    %91 = vector.load %arg8[%c0_118, %c0_119, %c0_120] : memref<8x8x128xf32, #tpu.memory_space<vmem>>, vector<8x8x128xf32>
    tpu.vector_store %arg8[%c0_118, %c0_119, %c0_120], %90 {strides = array<i32>} : memref<8x8x128xf32, #tpu.memory_space<vmem>>, vector<8x8x128xf32>,
    %c0_121 = arith.constant 0 : index
    %c0_122 = arith.constant 0 : index
    %c0_123 = arith.constant 0 : index
    %92 = vector.load %arg8[%c0_121, %c0_122, %c0_123] : memref<8x8x128xf32, #tpu.memory_space<vmem>>, vector<8x8x128xf32>
    %c0_124 = arith.constant 0 : index
    %c0_125 = arith.constant 0 : index
    %c0_126 = arith.constant 0 : index
    %93 = vector.load %arg5[%c0_124, %c0_125, %c0_126] : memref<1x8x1xf32, #tpu.memory_space<vmem>>, vector<1x8x1xf32>
    %94 = vector.broadcast %93 : vector<1x8x1xf32> to vector<8x8x128xf32>
    %95 = arith.addf %92, %94 : vector<8x8x128xf32>
    %c0_127 = arith.constant 0 : index
    %c0_128 = arith.constant 0 : index
    %c0_129 = arith.constant 0 : index
    %c0_130 = arith.constant 0 : index
    %96 = vector.load %arg6[%c0_127, %c0_128, %c0_129, %c0_130] : memref<1x8x8x128xf32, #tpu.memory_space<vmem>>, vector<1x8x8x128xf32>
    %97 = vector.shape_cast %96 : vector<1x8x8x128xf32> to vector<8x8x128xf32>
    %98 = vector.shape_cast %95 : vector<8x8x128xf32> to vector<1x8x8x128xf32>
    tpu.vector_store %arg6[%c0_127, %c0_128, %c0_129, %c0_130], %98 {strides = array<i32>} : memref<1x8x8x128xf32, #tpu.memory_space<vmem>>, vector<1x8x8x128xf32>,
    return
  }
  func.func @transform_0(%arg0: i32, %arg1: i32) -> (i32, i32, i32, i32) {
    %c0_i32 = arith.constant 0 : i32
    %c0_i32_0 = arith.constant 0 : i32
    %c0_i32_1 = arith.constant 0 : i32
    return %arg0, %arg1, %c0_i32, %c0_i32_0 : i32, i32, i32, i32
  }
  func.func @transform_1(%arg0: i32, %arg1: i32) -> (i32, i32, i32, i32) {
    %c1_i32 = arith.constant 1 : i32
    %0 = arith.addi %arg1, %c1_i32 : i32
    %c4_i32 = arith.constant 4 : i32
    %1 = arith.muli %0, %c4_i32 : i32
    %c0_i32 = arith.constant 0 : i32
    %c0_i32_0 = arith.constant 0 : i32
    %c0_i32_1 = arith.constant 0 : i32
    return %arg0, %1, %c0_i32, %c0_i32_0 : i32, i32, i32, i32
  }
  func.func @transform_2(%arg0: i32, %arg1: i32) -> (i32, i32, i32, i32) {
    %c0_i32 = arith.constant 0 : i32
    %c0_i32_0 = arith.constant 0 : i32
    %c0_i32_1 = arith.constant 0 : i32
    %c0_i32_2 = arith.constant 0 : i32
    %c0_i32_3 = arith.constant 0 : i32
    return %c0_i32, %c0_i32_0, %c0_i32_1, %c0_i32_2 : i32, i32, i32, i32
  }
  func.func @transform_3(%arg0: i32, %arg1: i32) -> (i32, i32, i32) {
    %c0_i32 = arith.constant 0 : i32
    %c0_i32_0 = arith.constant 0 : i32
    %c0_i32_1 = arith.constant 0 : i32
    %c0_i32_2 = arith.constant 0 : i32
    return %c0_i32, %c0_i32_0, %c0_i32_1 : i32, i32, i32
  }
  func.func @transform_4(%arg0: i32, %arg1: i32) -> (i32, i32, i32, i32) {
    %c0_i32 = arith.constant 0 : i32
    %c0_i32_0 = arith.constant 0 : i32
    %c0_i32_1 = arith.constant 0 : i32
    return %arg0, %arg1, %c0_i32, %c0_i32_0 : i32, i32, i32, i32
  }
}

</mosaic_0001>

<llo_original>
// kernel: upsample_conv_layer_forward.1
$region0: #{upsample_conv_layer_forward.1}
  #allocation0 [shape = 'u32[]', space=smem, size = 0x4, offset = 0x4, fixed_abs, tag = 'smem constant byte address 0x4 - core index']
  #allocation1 [shape = 'u32[72,128]{1,0:T(1,128)}', space=vmem, size = 0x9000, scoped, tag = 'internal scratch']
  #allocation2 [shape = 'f32[10,4,130]{2,1,0:T(4,128)}', space=vmem, size = 0xa000, scoped, tag = 'scratch operand']
  #allocation3 [shape = 'f32[8,8,128]{2,1,0:T(8,128)}', space=vmem, size = 0x8000, scoped, tag = 'scratch operand']
  %s0 = inlined_call_operand.vmem [shape: f32[2,40,4,130], index: 0, kind: input, shape index: {}, may-alias: {0,1}]
  %s1 = inlined_call_operand.vmem [shape: f32[2,40,4,130], index: 1, kind: input, shape index: {}, may-alias: {0,1}]
  %s2 = inlined_call_operand.vmem [shape: f32[3,3,8,4], index: 2, kind: input, shape index: {}]
  %s3 = inlined_call_operand.vmem [shape: f32[1,8,1], index: 3, kind: input, shape index: {}]
  %s4 = inlined_call_operand.vmem [shape: f32[2,32,8,128], index: 4, kind: output, shape index: {}]
  %s5 = sld [smem:[#allocation0]]
  $region49: #{upsample_conv_layer_forward.1} parent=0
    _
  %s7 = ssub.s32 1, %s5
  %s8 = scalar_select 0, %s7, %s5
  loop: start=0, step=1, limit=10
  $region2: #{upsample_conv_layer_forward.1} parent=0 // loop_pre_header
    _
  $region3: #{upsample_conv_layer_forward.1} parent=0 // loop_header
    %s10 = sphi 0, %s14
    %p11 = scmp.ge.s32.totalorder %s10, 10
    %s17 = sphi 0, %s29
    %s18 = sphi 0, %s25
    %s19 = sphi 0, %s17
    %s20 = sphi 0, %s18
    %s21 = sphi 0, %s19
    %s22 = sphi 0, %s20
    %s34 = sphi 0, %s36
    %s37 = sphi 0, %s34
    %s38 = sphi 0, %s37
    %s54 = sphi 0, %s38
    %s66 = sphi 0, %s68
    %s69 = sphi 0, %s66
    %s70 = sphi 0, %s69
    %s86 = sphi 0, %s70
    %s90 = sphi 0, %s90
    %s92 = sphi 0, %s90
    %s93 = sphi 0, %s92
    %s107 = sphi 0, %s93
    %s111 = sphi 0, %s111
    %s113 = sphi 0, %s111
    %s114 = sphi 0, %s113
    %s128 = sphi 0, %s114
    %s136 = sphi 0, %s138
    %s139 = sphi 0, %s136
    %s140 = sphi 0, %s139
    %s156 = sphi 0, %s140
  $region4: #{upsample_conv_layer_forward.1} parent=0 // loop_header_branch
    %13 = sbr.rel (%p11) target = $region8
  $region5: #{upsample_conv_layer_forward.1} parent=0 // loop_body
    %s15 = ssub.s32 %s10, 1
    %s16 = ssub.s32 %s10, 2
    %s23 = sadd.s32 1, %s18
    %p24 = scmp.ge.s32.totalorder %s23, 4
    %s25 = scalar_select %p24, 0, %s23
    %s26 = sadd.s32 1, %s17
    %s27 = scalar_select %p24, %s26, %s17
    %p28 = scmp.ge.s32.totalorder %s27, 2
    %s29 = scalar_select %p28, 0, %s27
    %s30 = ssub.s32 %s17, %s29
    %s31 = ssub.s32 %s18, %s25
    %s32 = sor.u32 %s30, %s31
    %p33 = scmp.eq.s32.totalorder %s32, 0
    %s35 = sadd.s32 %s34, 1
    %s36 = scalar_select %p33, %s34, %s35
    %p39 = pneg %p33
    %p40 = scmp.eq.s32.totalorder %s10, 7
    %p41 = por %p39, %p40
    %p42 = scmp.ne.s32.totalorder %s34, %s37
    %p43 = scmp.eq.s32.totalorder %s10, 0
    %p44 = por %p42, %p43
    %p45 = scmp.ne.s32.totalorder %s34, %s37
    %p46 = scmp.eq.s32.totalorder %s15, 7
    %p47 = por %p45, %p46
    %p48 = scmp.ne.s32.totalorder %s37, %s38
    %p49 = scmp.eq.s32.totalorder %s15, 0
    %p50 = por %p48, %p49
    %p51 = scmp.ne.s32.totalorder %s37, %s38
    %p52 = scmp.eq.s32.totalorder %s16, 7
    %p53 = por %p51, %p52
    %p55 = scmp.ne.s32.totalorder %s38, %s54
    %p56 = scmp.eq.s32.totalorder %s16, 0
    %p57 = por %p55, %p56
    %s58 = sadd.s32 %s18, 1
    %s59 = smul.u32 %s58, 4
    %s60 = sadd.s32 %s25, 1
    %s61 = smul.u32 %s60, 4
    %s62 = ssub.s32 %s17, %s29
    %s63 = ssub.s32 %s59, %s61
    %s64 = sor.u32 %s62, %s63
    %p65 = scmp.eq.s32.totalorder %s64, 0
    %s67 = sadd.s32 %s66, 1
    %s68 = scalar_select %p65, %s66, %s67
    %p71 = pneg %p65
    %p72 = scmp.eq.s32.totalorder %s10, 7
    %p73 = por %p71, %p72
    %p74 = scmp.ne.s32.totalorder %s66, %s69
    %p75 = scmp.eq.s32.totalorder %s10, 0
    %p76 = por %p74, %p75
    %p77 = scmp.ne.s32.totalorder %s66, %s69
    %p78 = scmp.eq.s32.totalorder %s15, 7
    %p79 = por %p77, %p78
    %p80 = scmp.ne.s32.totalorder %s69, %s70
    %p81 = scmp.eq.s32.totalorder %s15, 0
    %p82 = por %p80, %p81
    %p83 = scmp.ne.s32.totalorder %s69, %s70
    %p84 = scmp.eq.s32.totalorder %s16, 7
    %p85 = por %p83, %p84
    %p87 = scmp.ne.s32.totalorder %s70, %s86
    %p88 = scmp.eq.s32.totalorder %s16, 0
    %p89 = por %p87, %p88
    %s91 = sadd.s32 %s90, 1
    %p94 = scmp.eq.s32.totalorder %s10, 7
    %p95 = scmp.ne.s32.totalorder %s90, %s92
    %p96 = scmp.eq.s32.totalorder %s10, 0
    %p97 = por %p95, %p96
    %p98 = scmp.ne.s32.totalorder %s90, %s92
    %p99 = scmp.eq.s32.totalorder %s15, 7
    %p100 = por %p98, %p99
    %p101 = scmp.ne.s32.totalorder %s92, %s93
    %p102 = scmp.eq.s32.totalorder %s15, 0
    %p103 = por %p101, %p102
    %p104 = scmp.ne.s32.totalorder %s92, %s93
    %p105 = scmp.eq.s32.totalorder %s16, 7
    %p106 = por %p104, %p105
    %p108 = scmp.ne.s32.totalorder %s93, %s107
    %p109 = scmp.eq.s32.totalorder %s16, 0
    %p110 = por %p108, %p109
    %s112 = sadd.s32 %s111, 1
    %p115 = scmp.eq.s32.totalorder %s10, 7
    %p116 = scmp.ne.s32.totalorder %s111, %s113
    %p117 = scmp.eq.s32.totalorder %s10, 0
    %p118 = por %p116, %p117
    %p119 = scmp.ne.s32.totalorder %s111, %s113
    %p120 = scmp.eq.s32.totalorder %s15, 7
    %p121 = por %p119, %p120
    %p122 = scmp.ne.s32.totalorder %s113, %s114
    %p123 = scmp.eq.s32.totalorder %s15, 0
    %p124 = por %p122, %p123
    %p125 = scmp.ne.s32.totalorder %s113, %s114
    %p126 = scmp.eq.s32.totalorder %s16, 7
    %p127 = por %p125, %p126
    %p129 = scmp.ne.s32.totalorder %s114, %s128
    %p130 = scmp.eq.s32.totalorder %s16, 0
    %p131 = por %p129, %p130
    %s132 = ssub.s32 %s17, %s29
    %s133 = ssub.s32 %s18, %s25
    %s134 = sor.u32 %s132, %s133
    %p135 = scmp.eq.s32.totalorder %s134, 0
    %s137 = sadd.s32 %s136, 1
    %s138 = scalar_select %p135, %s136, %s137
    %p141 = pneg %p135
    %p142 = scmp.eq.s32.totalorder %s10, 7
    %p143 = por %p141, %p142
    %p144 = scmp.ne.s32.totalorder %s136, %s139
    %p145 = scmp.eq.s32.totalorder %s10, 0
    %p146 = por %p144, %p145
    %p147 = scmp.ne.s32.totalorder %s136, %s139
    %p148 = scmp.eq.s32.totalorder %s15, 7
    %p149 = por %p147, %p148
    %p150 = scmp.ne.s32.totalorder %s139, %s140
    %p151 = scmp.eq.s32.totalorder %s15, 0
    %p152 = por %p150, %p151
    %p153 = scmp.ne.s32.totalorder %s139, %s140
    %p154 = scmp.eq.s32.totalorder %s16, 7
    %p155 = por %p153, %p154
    %p157 = scmp.ne.s32.totalorder %s140, %s156
    %p158 = scmp.eq.s32.totalorder %s16, 0
    %p159 = por %p157, %p158
    %p160 = scmp.le.s32.totalorder 1, %s10
    %p161 = scmp.lt.s32.totalorder %s10, 9
    %p162 = pnand %p160, %p161
    %p163 = pneg %p162
    // Predicated region
    $region9: #{upsample_conv_layer_forward.1} parent=5 // pred_check
      _
    $region10: #{upsample_conv_layer_forward.1} parent=5 // pred_check_branch
      %165 = sbr.rel (%p162) target = $region12
    $region11: #{upsample_conv_layer_forward.1} parent=5 // pred_region
      %s166 = ssub.s32 %s10, 1
      // Predicated region
      $region13: #{upsample_conv_layer_forward.1} parent=11 // pred_check
        %p167 = pneg %p103
      $region14: #{upsample_conv_layer_forward.1} parent=11 // pred_check_branch
        %169 = sbr.rel (%p167) target = $region16
      $region15: #{upsample_conv_layer_forward.1} parent=11 // pred_region
        _
      $region16: #{upsample_conv_layer_forward.1} parent=11 // pred_fallthru
        _
      // Predicated region
      $region17: #{upsample_conv_layer_forward.1} parent=11 // pred_check
        %p170 = pneg %p124
      $region18: #{upsample_conv_layer_forward.1} parent=11 // pred_check_branch
        %172 = sbr.rel (%p170) target = $region20
      $region19: #{upsample_conv_layer_forward.1} parent=11 // pred_region
        _
      $region20: #{upsample_conv_layer_forward.1} parent=11 // pred_fallthru
        _
    $region12: #{upsample_conv_layer_forward.1} parent=5 // pred_fallthru
      _
    %p173 = scmp.lt.s32.totalorder %s10, 8
    // Predicated region
    $region21: #{upsample_conv_layer_forward.1} parent=5 // pred_check
      %p174 = pneg %p173
    $region22: #{upsample_conv_layer_forward.1} parent=5 // pred_check_branch
      %176 = sbr.rel (%p174) target = $region24
    $region23: #{upsample_conv_layer_forward.1} parent=5 // pred_region
      // Predicated region
      $region25: #{upsample_conv_layer_forward.1} parent=23 // pred_check
        %p177 = pneg %p44
      $region26: #{upsample_conv_layer_forward.1} parent=23 // pred_check_branch
        %179 = sbr.rel (%p177) target = $region28
      $region27: #{upsample_conv_layer_forward.1} parent=23 // pred_region
        %s180 = smul.u32 8, %s18
        %p181 = scmp.lt.s32.totalorder %s17, 1
        %s182 = scalar_select %p181, %s17, 1
        %p183 = scmp.lt.s32.totalorder %s180, 39
        %s184 = scalar_select %p183, %s180, 39
        %s185 = smul.addr %s184, 2
        %s186 = smul.addr %s182, 80
        %s187 = sadd.s32 %s185, %s186
        %s188 = smul.addr %s187, 4
        %s189 = scalar_lea.vmem %s0, %s188
        %s190 = smul.u32 8, %s18
      $region28: #{upsample_conv_layer_forward.1} parent=23 // pred_fallthru
        _
      // Predicated region
      $region29: #{upsample_conv_layer_forward.1} parent=23 // pred_check
        %p191 = pneg %p76
      $region30: #{upsample_conv_layer_forward.1} parent=23 // pred_check_branch
        %193 = sbr.rel (%p191) target = $region32
      $region31: #{upsample_conv_layer_forward.1} parent=23 // pred_region
        %s194 = sadd.s32 %s18, 1
        %s195 = smul.u32 %s194, 4
        %s196 = smul.u32 2, %s195
        %p197 = scmp.lt.s32.totalorder %s17, 1
        %s198 = scalar_select %p197, %s17, 1
        %p199 = scmp.lt.s32.totalorder %s196, 39
        %s200 = scalar_select %p199, %s196, 39
        %s201 = smul.addr %s200, 2
        %s202 = smul.addr %s198, 80
        %s203 = sadd.s32 %s201, %s202
        %s204 = smul.addr %s203, 4
        %s205 = scalar_lea.vmem %s1, %s204
        %s206 = sadd.s32 %s18, 1
        %s207 = smul.u32 %s206, 4
        %s208 = smul.u32 2, %s207
      $region32: #{upsample_conv_layer_forward.1} parent=23 // pred_fallthru
        _
    $region24: #{upsample_conv_layer_forward.1} parent=5 // pred_fallthru
      _
    %p209 = scmp.le.s32.totalorder 1, %s10
    %p210 = scmp.lt.s32.totalorder %s10, 9
    %p211 = pnand %p209, %p210
    %p212 = pneg %p211
    // Predicated region
    $region33: #{upsample_conv_layer_forward.1} parent=5 // pred_check
      _
    $region34: #{upsample_conv_layer_forward.1} parent=5 // pred_check_branch
      %214 = sbr.rel (%p211) target = $region36
    $region35: #{upsample_conv_layer_forward.1} parent=5 // pred_region
      %s215 = ssub.s32 %s10, 1
      %s216 = smul.u32 8, %s20
      %p217 = scmp.lt.s32.totalorder %s19, 1
      %s218 = scalar_select %p217, %s19, 1
      %p219 = scmp.lt.s32.totalorder %s216, 39
      %s220 = scalar_select %p219, %s216, 39
      %s221 = smul.addr %s220, 2
      %s222 = smul.addr %s218, 80
      %s223 = sadd.s32 %s221, %s222
      %s224 = smul.addr %s223, 4
      %s225 = scalar_lea.vmem %s0, %s224
      %p226 = pneg %p50
      %p227 = pneg %p47
      %s228 = sadd.s32 %s20, 1
      %s229 = smul.u32 %s228, 4
      %s230 = smul.u32 2, %s229
      %p231 = scmp.lt.s32.totalorder %s19, 1
      %s232 = scalar_select %p231, %s19, 1
      %p233 = scmp.lt.s32.totalorder %s230, 39
      %s234 = scalar_select %p233, %s230, 39
      %s235 = smul.addr %s234, 2
      %s236 = smul.addr %s232, 80
      %s237 = sadd.s32 %s235, %s236
      %s238 = smul.addr %s237, 4
      %s239 = scalar_lea.vmem %s1, %s238
      %p240 = pneg %p82
      %p241 = pneg %p79
      %p242 = pneg %p103
      %p243 = pneg %p100
      %p244 = pneg %p124
      %p245 = pneg %p121
      %p246 = pneg %p152
      %p247 = pneg %p149
      %s248 = smul.u32 8, %s20
      %p249 = scmp.lt.s32.totalorder %s19, 1
      %s250 = scalar_select %p249, %s19, 1
      %p251 = scmp.lt.s32.totalorder %s248, 31
      %s252 = scalar_select %p251, %s248, 31
      %s253 = smul.addr %s250, 32
      %s254 = sadd.s32 %s252, %s253
      %s255 = smul.addr %s254, 8
      %s256 = scalar_lea.vmem %s4, %s255
      %s257 = smul.u32 8, %s20
      %p258 = scmp.lt.s32.totalorder %s19, 1
      %s259 = scalar_select %p258, %s19, 1
      %p260 = scmp.lt.s32.totalorder %s257, 39
      %s261 = scalar_select %p260, %s257, 39
      %s262 = smul.addr %s261, 2
      %s263 = smul.addr %s259, 80
      %s264 = sadd.s32 %s262, %s263
      %s265 = smul.addr %s264, 4
      %s266 = scalar_lea.vmem %s0, %s265
      %s267 = smul.u32 8, %s20
      %s268 = sadd.s32 %s20, 1
      %s269 = smul.u32 %s268, 4
      %s270 = smul.u32 2, %s269
      %p271 = scmp.lt.s32.totalorder %s19, 1
      %s272 = scalar_select %p271, %s19, 1
      %p273 = scmp.lt.s32.totalorder %s270, 39
      %s274 = scalar_select %p273, %s270, 39
      %s275 = smul.addr %s274, 2
      %s276 = smul.addr %s272, 80
      %s277 = sadd.s32 %s275, %s276
      %s278 = smul.addr %s277, 4
      %s279 = scalar_lea.vmem %s1, %s278
      %s280 = sadd.s32 %s20, 1
      %s281 = smul.u32 %s280, 4
      %s282 = smul.u32 2, %s281
      %s283 = smul.u32 8, %s20
      %p284 = scmp.lt.s32.totalorder %s19, 1
      %s285 = scalar_select %p284, %s19, 1
      %p286 = scmp.lt.s32.totalorder %s283, 31
      %s287 = scalar_select %p286, %s283, 31
      %s288 = smul.addr %s285, 32
      %s289 = sadd.s32 %s287, %s288
      %s290 = smul.addr %s289, 8
      %s291 = scalar_lea.vmem %s4, %s290
      %s292 = smul.u32 8, %s20
      %v293 = vld [vmem:[%s266] sm:$0xff]
      %v294 = vld [vmem:[%s266 + $0x8] sm:$0xff]
      %v295 = vld [vmem:[%s266 + $0x10] sm:$0xff]
      %v296 = vld [vmem:[%s266 + $0x18] sm:$0xff]
      %v297 = vld [vmem:[%s266 + $0x20] sm:$0xff]
      %v298 = vld [vmem:[%s266 + $0x28] sm:$0xff]
      %v299 = vld [vmem:[%s266 + $0x30] sm:$0xff]
      %v300 = vld [vmem:[%s266 + $0x38] sm:$0xff]
      %vm301 = vcmask 1043456
      %vm302 = vcmask 15364
      %vm303 = vmor %vm302, %vm301
      %304 = vst.msk [vmem:[#allocation2] sm:$0xff] %vm303, %v293
      %305 = vst.msk [vmem:[#allocation2 + $0x8] sm:$0xff] %vm303, %v294
      %306 = vst.msk [vmem:[#allocation2 + $0x10] sm:$0xff] %vm303, %v295
      %307 = vst.msk [vmem:[#allocation2 + $0x18] sm:$0xff] %vm303, %v296
      %308 = vst.msk [vmem:[#allocation2 + $0x20] sm:$0xff] %vm303, %v297
      %309 = vst.msk [vmem:[#allocation2 + $0x28] sm:$0xff] %vm303, %v298
      %310 = vst.msk [vmem:[#allocation2 + $0x30] sm:$0xff] %vm303, %v299
      %311 = vst.msk [vmem:[#allocation2 + $0x38] sm:$0xff] %vm303, %v300
      %v312 = vld [vmem:[%s279] sm:$0xff]
      %v313 = vld [vmem:[%s279 + $0x8] sm:$0xff]
      %s314 = scalar_lea.vmem [#allocation2], 64
      %315 = vst.msk [vmem:[%s314] sm:$0xff] %vm303, %v312
      %316 = vst.msk [vmem:[%s314 + $0x8] sm:$0xff] %vm303, %v313
      %317 = vst [vmem:[#allocation3] sm:$0xff] 0.0
      %318 = vst [vmem:[#allocation3 + $0x8] sm:$0xff] 0.0
      %319 = vst [vmem:[#allocation3 + $0x10] sm:$0xff] 0.0
      %320 = vst [vmem:[#allocation3 + $0x18] sm:$0xff] 0.0
      %321 = vst [vmem:[#allocation3 + $0x20] sm:$0xff] 0.0
      %322 = vst [vmem:[#allocation3 + $0x28] sm:$0xff] 0.0
      %323 = vst [vmem:[#allocation3 + $0x30] sm:$0xff] 0.0
      %324 = vst [vmem:[#allocation3 + $0x38] sm:$0xff] 0.0
      %v325 = vld [vmem:[#allocation2] sm:$0xff]
      %v326 = vld [vmem:[#allocation2 + $0x8] sm:$0xff]
      %v327 = vld [vmem:[#allocation2 + $0x10] sm:$0xff]
      %v328 = vld [vmem:[#allocation2 + $0x18] sm:$0xff]
      %v329 = vld [vmem:[#allocation2 + $0x20] sm:$0xff]
      %v330 = vld [vmem:[#allocation2 + $0x28] sm:$0xff]
      %v331 = vld [vmem:[#allocation2 + $0x30] sm:$0xff]
      %v332 = vld [vmem:[#allocation2 + $0x38] sm:$0xff]
      %v333 = vld [vmem:[%s2] sm:$0xff]
      %v334 = vld [vmem:[#allocation3] sm:$0xff]
      %v335 = vld [vmem:[#allocation3 + $0x8] sm:$0xff]
      %v336 = vld [vmem:[#allocation3 + $0x10] sm:$0xff]
      %v337 = vld [vmem:[#allocation3 + $0x18] sm:$0xff]
      %v338 = vld [vmem:[#allocation3 + $0x20] sm:$0xff]
      %v339 = vld [vmem:[#allocation3 + $0x28] sm:$0xff]
      %v340 = vld [vmem:[#allocation3 + $0x30] sm:$0xff]
      %v341 = vld [vmem:[#allocation3 + $0x38] sm:$0xff]
      %vm342 = vcmask 31744
      %v344 = vsel %vm342, %v333, 0
      %v347 = vsel %vm301, %v325, 0
      %349 = vmatpush.msra.mxu0 0.0
      %350 = vmatpush.msra.mxu0 0.0
      %351 = vmatpush.msra.mxu0 0.0
      %352 = vmatpush.msra.mxu0 0.0
      %353 = vmatpush.msra.mxu0 0.0
      %354 = vmatpush.msra.mxu0 0.0
      %355 = vmatpush.msra.mxu0 0.0
      %356 = vmatpush.msra.mxu0 0.0
      %357 = vmatpush.msra.mxu0 0.0
      %358 = vmatpush.msra.mxu0 0.0
      %359 = vmatpush.msra.mxu0 0.0
      %360 = vmatpush.msra.mxu0 0.0
      %361 = vmatpush.msra.mxu0 0.0
      %362 = vmatpush.msra.mxu0 0.0
      %363 = vmatpush.msra.mxu0 0.0
      %364 = vmatpush.msra.mxu0 %v347
      %365 = vmatmul.f32.gmra.mxu0 %v344
      %v366 = vpop.f32.mrf.mxu0
      %v367 = vadd.f32 0.0, %v366
      %368 = vdwg.mxu0
      %v370 = vsel %vm301, %v326, 0
      %372 = vmatpush.msra.mxu0 0.0
      %373 = vmatpush.msra.mxu0 0.0
      %374 = vmatpush.msra.mxu0 0.0
      %375 = vmatpush.msra.mxu0 0.0
      %376 = vmatpush.msra.mxu0 0.0
      %377 = vmatpush.msra.mxu0 0.0
      %378 = vmatpush.msra.mxu0 0.0
      %379 = vmatpush.msra.mxu0 0.0
      %380 = vmatpush.msra.mxu0 0.0
      %381 = vmatpush.msra.mxu0 0.0
      %382 = vmatpush.msra.mxu0 0.0
      %383 = vmatpush.msra.mxu0 0.0
      %384 = vmatpush.msra.mxu0 0.0
      %385 = vmatpush.msra.mxu0 0.0
      %386 = vmatpush.msra.mxu0 0.0
      %387 = vmatpush.msra.mxu0 %v370
      %388 = vmatmul.f32.gmra.mxu0 %v344
      %v389 = vpop.f32.mrf.mxu0
      %v390 = vadd.f32 0.0, %v389
      %391 = vdwg.mxu0
      %v393 = vsel %vm301, %v327, 0
      %395 = vmatpush.msra.mxu0 0.0
      %396 = vmatpush.msra.mxu0 0.0
      %397 = vmatpush.msra.mxu0 0.0
      %398 = vmatpush.msra.mxu0 0.0
      %399 = vmatpush.msra.mxu0 0.0
      %400 = vmatpush.msra.mxu0 0.0
      %401 = vmatpush.msra.mxu0 0.0
      %402 = vmatpush.msra.mxu0 0.0
      %403 = vmatpush.msra.mxu0 0.0
      %404 = vmatpush.msra.mxu0 0.0
      %405 = vmatpush.msra.mxu0 0.0
      %406 = vmatpush.msra.mxu0 0.0
      %407 = vmatpush.msra.mxu0 0.0
      %408 = vmatpush.msra.mxu0 0.0
      %409 = vmatpush.msra.mxu0 0.0
      %410 = vmatpush.msra.mxu0 %v393
      %411 = vmatmul.f32.gmra.mxu0 %v344
      %v412 = vpop.f32.mrf.mxu0
      %v413 = vadd.f32 0.0, %v412
      %414 = vdwg.mxu0
      %v416 = vsel %vm301, %v328, 0
      %418 = vmatpush.msra.mxu0 0.0
      %419 = vmatpush.msra.mxu0 0.0
      %420 = vmatpush.msra.mxu0 0.0
      %421 = vmatpush.msra.mxu0 0.0
      %422 = vmatpush.msra.mxu0 0.0
      %423 = vmatpush.msra.mxu0 0.0
      %424 = vmatpush.msra.mxu0 0.0
      %425 = vmatpush.msra.mxu0 0.0
      %426 = vmatpush.msra.mxu0 0.0
      %427 = vmatpush.msra.mxu0 0.0
      %428 = vmatpush.msra.mxu0 0.0
      %429 = vmatpush.msra.mxu0 0.0
      %430 = vmatpush.msra.mxu0 0.0
      %431 = vmatpush.msra.mxu0 0.0
      %432 = vmatpush.msra.mxu0 0.0
      %433 = vmatpush.msra.mxu0 %v416
      %434 = vmatmul.f32.gmra.mxu0 %v344
      %v435 = vpop.f32.mrf.mxu0
      %v436 = vadd.f32 0.0, %v435
      %437 = vdwg.mxu0
      %v439 = vsel %vm301, %v329, 0
      %441 = vmatpush.msra.mxu0 0.0
      %442 = vmatpush.msra.mxu0 0.0
      %443 = vmatpush.msra.mxu0 0.0
      %444 = vmatpush.msra.mxu0 0.0
      %445 = vmatpush.msra.mxu0 0.0
      %446 = vmatpush.msra.mxu0 0.0
      %447 = vmatpush.msra.mxu0 0.0
      %448 = vmatpush.msra.mxu0 0.0
      %449 = vmatpush.msra.mxu0 0.0
      %450 = vmatpush.msra.mxu0 0.0
      %451 = vmatpush.msra.mxu0 0.0
      %452 = vmatpush.msra.mxu0 0.0
      %453 = vmatpush.msra.mxu0 0.0
      %454 = vmatpush.msra.mxu0 0.0
      %455 = vmatpush.msra.mxu0 0.0
      %456 = vmatpush.msra.mxu0 %v439
      %457 = vmatmul.f32.gmra.mxu0 %v344
      %v458 = vpop.f32.mrf.mxu0
      %v459 = vadd.f32 0.0, %v458
      %460 = vdwg.mxu0
      %v462 = vsel %vm301, %v330, 0
      %464 = vmatpush.msra.mxu0 0.0
      %465 = vmatpush.msra.mxu0 0.0
      %466 = vmatpush.msra.mxu0 0.0
      %467 = vmatpush.msra.mxu0 0.0
      %468 = vmatpush.msra.mxu0 0.0
      %469 = vmatpush.msra.mxu0 0.0
      %470 = vmatpush.msra.mxu0 0.0
      %471 = vmatpush.msra.mxu0 0.0
      %472 = vmatpush.msra.mxu0 0.0
      %473 = vmatpush.msra.mxu0 0.0
      %474 = vmatpush.msra.mxu0 0.0
      %475 = vmatpush.msra.mxu0 0.0
      %476 = vmatpush.msra.mxu0 0.0
      %477 = vmatpush.msra.mxu0 0.0
      %478 = vmatpush.msra.mxu0 0.0
      %479 = vmatpush.msra.mxu0 %v462
      %480 = vmatmul.f32.gmra.mxu0 %v344
      %v481 = vpop.f32.mrf.mxu0
      %v482 = vadd.f32 0.0, %v481
      %483 = vdwg.mxu0
      %v485 = vsel %vm301, %v331, 0
      %487 = vmatpush.msra.mxu0 0.0
      %488 = vmatpush.msra.mxu0 0.0
      %489 = vmatpush.msra.mxu0 0.0
      %490 = vmatpush.msra.mxu0 0.0
      %491 = vmatpush.msra.mxu0 0.0
      %492 = vmatpush.msra.mxu0 0.0
      %493 = vmatpush.msra.mxu0 0.0
      %494 = vmatpush.msra.mxu0 0.0
      %495 = vmatpush.msra.mxu0 0.0
      %496 = vmatpush.msra.mxu0 0.0
      %497 = vmatpush.msra.mxu0 0.0
      %498 = vmatpush.msra.mxu0 0.0
      %499 = vmatpush.msra.mxu0 0.0
      %500 = vmatpush.msra.mxu0 0.0
      %501 = vmatpush.msra.mxu0 0.0
      %502 = vmatpush.msra.mxu0 %v485
      %503 = vmatmul.f32.gmra.mxu0 %v344
      %v504 = vpop.f32.mrf.mxu0
      %v505 = vadd.f32 0.0, %v504
      %506 = vdwg.mxu0
      %v508 = vsel %vm301, %v332, 0
      %510 = vmatpush.msra.mxu0 0.0
      %511 = vmatpush.msra.mxu0 0.0
      %512 = vmatpush.msra.mxu0 0.0
      %513 = vmatpush.msra.mxu0 0.0
      %514 = vmatpush.msra.mxu0 0.0
      %515 = vmatpush.msra.mxu0 0.0
      %516 = vmatpush.msra.mxu0 0.0
      %517 = vmatpush.msra.mxu0 0.0
      %518 = vmatpush.msra.mxu0 0.0
      %519 = vmatpush.msra.mxu0 0.0
      %520 = vmatpush.msra.mxu0 0.0
      %521 = vmatpush.msra.mxu0 0.0
      %522 = vmatpush.msra.mxu0 0.0
      %523 = vmatpush.msra.mxu0 0.0
      %524 = vmatpush.msra.mxu0 0.0
      %525 = vmatpush.msra.mxu0 %v508
      %526 = vmatmul.f32.gmra.mxu0 %v344
      %v527 = vpop.f32.mrf.mxu0
      %v528 = vadd.f32 0.0, %v527
      %529 = vdwg.mxu0
      %v530 = vadd.f32 %v334, %v367
      %v531 = vadd.f32 %v335, %v390
      %v532 = vadd.f32 %v336, %v413
      %v533 = vadd.f32 %v337, %v436
      %v534 = vadd.f32 %v338, %v459
      %v535 = vadd.f32 %v339, %v482
      %v536 = vadd.f32 %v340, %v505
      %v537 = vadd.f32 %v341, %v528
      %538 = vst [vmem:[#allocation3] sm:$0xff] %v530
      %539 = vst [vmem:[#allocation3 + $0x8] sm:$0xff] %v531
      %540 = vst [vmem:[#allocation3 + $0x10] sm:$0xff] %v532
      %541 = vst [vmem:[#allocation3 + $0x18] sm:$0xff] %v533
      %542 = vst [vmem:[#allocation3 + $0x20] sm:$0xff] %v534
      %543 = vst [vmem:[#allocation3 + $0x28] sm:$0xff] %v535
      %544 = vst [vmem:[#allocation3 + $0x30] sm:$0xff] %v536
      %545 = vst [vmem:[#allocation3 + $0x38] sm:$0xff] %v537
      %s546 = scalar_lea.vmem %s2, 8
      %v547 = vld [vmem:[%s546] sm:$0xff]
      %v548 = vld [vmem:[#allocation3] sm:$0xff]
      %v549 = vld [vmem:[#allocation3 + $0x8] sm:$0xff]
      %v550 = vld [vmem:[#allocation3 + $0x10] sm:$0xff]
      %v551 = vld [vmem:[#allocation3 + $0x18] sm:$0xff]
      %v552 = vld [vmem:[#allocation3 + $0x20] sm:$0xff]
      %v553 = vld [vmem:[#allocation3 + $0x28] sm:$0xff]
      %v554 = vld [vmem:[#allocation3 + $0x30] sm:$0xff]
      %v555 = vld [vmem:[#allocation3 + $0x38] sm:$0xff]
      %556 = vst [vmem:[#allocation1] ss:$2 sm:$0xff] %v325
      %v557 = vld.sshfl [vmem:[#allocation1] sm:$0xff pattern:$0x75316420]
      %v558 = vld.sshfl [vmem:[#allocation1 + $0x8] sm:$0xff pattern:$0x75316420]
      %559 = vrot.lane.b32.xlu0 %v557, 127
      %v560 = vpop.permute.xlu0 %559
      %561 = vrot.lane.b32.xlu0 %v558, 127
      %v562 = vpop.permute.xlu0 %561
      %vm563 = vcmask 1039360
      %v564 = vsel %vm563, %v560, %v562
      %v566 = vsel %vm342, %v547, 0
      %v568 = vsel %vm301, %v564, 0
      %570 = vmatpush.msra.mxu0 0.0
      %571 = vmatpush.msra.mxu0 0.0
      %572 = vmatpush.msra.mxu0 0.0
      %573 = vmatpush.msra.mxu0 0.0
      %574 = vmatpush.msra.mxu0 0.0
      %575 = vmatpush.msra.mxu0 0.0
      %576 = vmatpush.msra.mxu0 0.0
      %577 = vmatpush.msra.mxu0 0.0
      %578 = vmatpush.msra.mxu0 0.0
      %579 = vmatpush.msra.mxu0 0.0
      %580 = vmatpush.msra.mxu0 0.0
      %581 = vmatpush.msra.mxu0 0.0
      %582 = vmatpush.msra.mxu0 0.0
      %583 = vmatpush.msra.mxu0 0.0
      %584 = vmatpush.msra.mxu0 0.0
      %585 = vmatpush.msra.mxu0 %v568
      %586 = vmatmul.f32.gmra.mxu0 %v566
      %v587 = vpop.f32.mrf.mxu0
      %v588 = vadd.f32 0.0, %v587
      %589 = vdwg.mxu0
      %590 = vst [vmem:[#allocation1] ss:$2 sm:$0xff] %v326
      %v591 = vld.sshfl [vmem:[#allocation1] sm:$0xff pattern:$0x75316420]
      %v592 = vld.sshfl [vmem:[#allocation1 + $0x8] sm:$0xff pattern:$0x75316420]
      %593 = vrot.lane.b32.xlu0 %v591, 127
      %v594 = vpop.permute.xlu0 %593
      %595 = vrot.lane.b32.xlu0 %v592, 127
      %v596 = vpop.permute.xlu0 %595
      %v597 = vsel %vm563, %v594, %v596
      %v598 = vsel %vm301, %v597, 0
      %600 = vmatpush.msra.mxu0 0.0
      %601 = vmatpush.msra.mxu0 0.0
      %602 = vmatpush.msra.mxu0 0.0
      %603 = vmatpush.msra.mxu0 0.0
      %604 = vmatpush.msra.mxu0 0.0
      %605 = vmatpush.msra.mxu0 0.0
      %606 = vmatpush.msra.mxu0 0.0
      %607 = vmatpush.msra.mxu0 0.0
      %608 = vmatpush.msra.mxu0 0.0
      %609 = vmatpush.msra.mxu0 0.0
      %610 = vmatpush.msra.mxu0 0.0
      %611 = vmatpush.msra.mxu0 0.0
      %612 = vmatpush.msra.mxu0 0.0
      %613 = vmatpush.msra.mxu0 0.0
      %614 = vmatpush.msra.mxu0 0.0
      %615 = vmatpush.msra.mxu0 %v598
      %616 = vmatmul.f32.gmra.mxu0 %v566
      %v617 = vpop.f32.mrf.mxu0
      %v618 = vadd.f32 0.0, %v617
      %619 = vdwg.mxu0
      %620 = vst [vmem:[#allocation1] ss:$2 sm:$0xff] %v327
      %v621 = vld.sshfl [vmem:[#allocation1] sm:$0xff pattern:$0x75316420]
      %v622 = vld.sshfl [vmem:[#allocation1 + $0x8] sm:$0xff pattern:$0x75316420]
      %623 = vrot.lane.b32.xlu0 %v621, 127
      %v624 = vpop.permute.xlu0 %623
      %625 = vrot.lane.b32.xlu0 %v622, 127
      %v626 = vpop.permute.xlu0 %625
      %v627 = vsel %vm563, %v624, %v626
      %v628 = vsel %vm301, %v627, 0
      %630 = vmatpush.msra.mxu0 0.0
      %631 = vmatpush.msra.mxu0 0.0
      %632 = vmatpush.msra.mxu0 0.0
      %633 = vmatpush.msra.mxu0 0.0
      %634 = vmatpush.msra.mxu0 0.0
      %635 = vmatpush.msra.mxu0 0.0
      %636 = vmatpush.msra.mxu0 0.0
      %637 = vmatpush.msra.mxu0 0.0
      %638 = vmatpush.msra.mxu0 0.0
      %639 = vmatpush.msra.mxu0 0.0
      %640 = vmatpush.msra.mxu0 0.0
      %641 = vmatpush.msra.mxu0 0.0
      %642 = vmatpush.msra.mxu0 0.0
      %643 = vmatpush.msra.mxu0 0.0
      %644 = vmatpush.msra.mxu0 0.0
      %645 = vmatpush.msra.mxu0 %v628
      %646 = vmatmul.f32.gmra.mxu0 %v566
      %v647 = vpop.f32.mrf.mxu0
      %v648 = vadd.f32 0.0, %v647
      %649 = vdwg.mxu0
      %650 = vst [vmem:[#allocation1] ss:$2 sm:$0xff] %v328
      %v651 = vld.sshfl [vmem:[#allocation1] sm:$0xff pattern:$0x75316420]
      %v652 = vld.sshfl [vmem:[#allocation1 + $0x8] sm:$0xff pattern:$0x75316420]
      %653 = vrot.lane.b32.xlu0 %v651, 127
      %v654 = vpop.permute.xlu0 %653
      %655 = vrot.lane.b32.xlu0 %v652, 127
      %v656 = vpop.permute.xlu0 %655
      %v657 = vsel %vm563, %v654, %v656
      %v658 = vsel %vm301, %v657, 0
      %660 = vmatpush.msra.mxu0 0.0
      %661 = vmatpush.msra.mxu0 0.0
      %662 = vmatpush.msra.mxu0 0.0
      %663 = vmatpush.msra.mxu0 0.0
      %664 = vmatpush.msra.mxu0 0.0
      %665 = vmatpush.msra.mxu0 0.0
      %666 = vmatpush.msra.mxu0 0.0
      %667 = vmatpush.msra.mxu0 0.0
      %668 = vmatpush.msra.mxu0 0.0
      %669 = vmatpush.msra.mxu0 0.0
      %670 = vmatpush.msra.mxu0 0.0
      %671 = vmatpush.msra.mxu0 0.0
      %672 = vmatpush.msra.mxu0 0.0
      %673 = vmatpush.msra.mxu0 0.0
      %674 = vmatpush.msra.mxu0 0.0
      %675 = vmatpush.msra.mxu0 %v658
      %676 = vmatmul.f32.gmra.mxu0 %v566
      %v677 = vpop.f32.mrf.mxu0
      %v678 = vadd.f32 0.0, %v677
      %679 = vdwg.mxu0
      %680 = vst [vmem:[#allocation1] ss:$2 sm:$0xff] %v329
      %v681 = vld.sshfl [vmem:[#allocation1] sm:$0xff pattern:$0x75316420]
      %v682 = vld.sshfl [vmem:[#allocation1 + $0x8] sm:$0xff pattern:$0x75316420]
      %683 = vrot.lane.b32.xlu0 %v681, 127
      %v684 = vpop.permute.xlu0 %683
      %685 = vrot.lane.b32.xlu0 %v682, 127
      %v686 = vpop.permute.xlu0 %685
      %v687 = vsel %vm563, %v684, %v686
      %v688 = vsel %vm301, %v687, 0
      %690 = vmatpush.msra.mxu0 0.0
      %691 = vmatpush.msra.mxu0 0.0
      %692 = vmatpush.msra.mxu0 0.0
      %693 = vmatpush.msra.mxu0 0.0
      %694 = vmatpush.msra.mxu0 0.0
      %695 = vmatpush.msra.mxu0 0.0
      %696 = vmatpush.msra.mxu0 0.0
      %697 = vmatpush.msra.mxu0 0.0
      %698 = vmatpush.msra.mxu0 0.0
      %699 = vmatpush.msra.mxu0 0.0
      %700 = vmatpush.msra.mxu0 0.0
      %701 = vmatpush.msra.mxu0 0.0
      %702 = vmatpush.msra.mxu0 0.0
      %703 = vmatpush.msra.mxu0 0.0
      %704 = vmatpush.msra.mxu0 0.0
      %705 = vmatpush.msra.mxu0 %v688
      %706 = vmatmul.f32.gmra.mxu0 %v566
      %v707 = vpop.f32.mrf.mxu0
      %v708 = vadd.f32 0.0, %v707
      %709 = vdwg.mxu0
      %710 = vst [vmem:[#allocation1] ss:$2 sm:$0xff] %v330
      %v711 = vld.sshfl [vmem:[#allocation1] sm:$0xff pattern:$0x75316420]
      %v712 = vld.sshfl [vmem:[#allocation1 + $0x8] sm:$0xff pattern:$0x75316420]
      %713 = vrot.lane.b32.xlu0 %v711, 127
      %v714 = vpop.permute.xlu0 %713
      %715 = vrot.lane.b32.xlu0 %v712, 127
      %v716 = vpop.permute.xlu0 %715
      %v717 = vsel %vm563, %v714, %v716
      %v718 = vsel %vm301, %v717, 0
      %720 = vmatpush.msra.mxu0 0.0
      %721 = vmatpush.msra.mxu0 0.0
      %722 = vmatpush.msra.mxu0 0.0
      %723 = vmatpush.msra.mxu0 0.0
      %724 = vmatpush.msra.mxu0 0.0
      %725 = vmatpush.msra.mxu0 0.0
      %726 = vmatpush.msra.mxu0 0.0
      %727 = vmatpush.msra.mxu0 0.0
      %728 = vmatpush.msra.mxu0 0.0
      %729 = vmatpush.msra.mxu0 0.0
      %730 = vmatpush.msra.mxu0 0.0
      %731 = vmatpush.msra.mxu0 0.0
      %732 = vmatpush.msra.mxu0 0.0
      %733 = vmatpush.msra.mxu0 0.0
      %734 = vmatpush.msra.mxu0 0.0
      %735 = vmatpush.msra.mxu0 %v718
      %736 = vmatmul.f32.gmra.mxu0 %v566
      %v737 = vpop.f32.mrf.mxu0
      %v738 = vadd.f32 0.0, %v737
      %739 = vdwg.mxu0
      %740 = vst [vmem:[#allocation1] ss:$2 sm:$0xff] %v331
      %v741 = vld.sshfl [vmem:[#allocation1] sm:$0xff pattern:$0x75316420]
      %v742 = vld.sshfl [vmem:[#allocation1 + $0x8] sm:$0xff pattern:$0x75316420]
      %743 = vrot.lane.b32.xlu0 %v741, 127
      %v744 = vpop.permute.xlu0 %743
      %745 = vrot.lane.b32.xlu0 %v742, 127
      %v746 = vpop.permute.xlu0 %745
      %v747 = vsel %vm563, %v744, %v746
      %v748 = vsel %vm301, %v747, 0
      %750 = vmatpush.msra.mxu0 0.0
      %751 = vmatpush.msra.mxu0 0.0
      %752 = vmatpush.msra.mxu0 0.0
      %753 = vmatpush.msra.mxu0 0.0
      %754 = vmatpush.msra.mxu0 0.0
      %755 = vmatpush.msra.mxu0 0.0
      %756 = vmatpush.msra.mxu0 0.0
      %757 = vmatpush.msra.mxu0 0.0
      %758 = vmatpush.msra.mxu0 0.0
      %759 = vmatpush.msra.mxu0 0.0
      %760 = vmatpush.msra.mxu0 0.0
      %761 = vmatpush.msra.mxu0 0.0
      %762 = vmatpush.msra.mxu0 0.0
      %763 = vmatpush.msra.mxu0 0.0
      %764 = vmatpush.msra.mxu0 0.0
      %765 = vmatpush.msra.mxu0 %v748
      %766 = vmatmul.f32.gmra.mxu0 %v566
      %v767 = vpop.f32.mrf.mxu0
      %v768 = vadd.f32 0.0, %v767
      %769 = vdwg.mxu0
      %770 = vst [vmem:[#allocation1] ss:$2 sm:$0xff] %v332
      %v771 = vld.sshfl [vmem:[#allocation1] sm:$0xff pattern:$0x75316420]
      %v772 = vld.sshfl [vmem:[#allocation1 + $0x8] sm:$0xff pattern:$0x75316420]
      %773 = vrot.lane.b32.xlu0 %v771, 127
      %v774 = vpop.permute.xlu0 %773
      %775 = vrot.lane.b32.xlu0 %v772, 127
      %v776 = vpop.permute.xlu0 %775
      %v777 = vsel %vm563, %v774, %v776
      %v778 = vsel %vm301, %v777, 0
      %780 = vmatpush.msra.mxu0 0.0
      %781 = vmatpush.msra.mxu0 0.0
      %782 = vmatpush.msra.mxu0 0.0
      %783 = vmatpush.msra.mxu0 0.0
      %784 = vmatpush.msra.mxu0 0.0
      %785 = vmatpush.msra.mxu0 0.0
      %786 = vmatpush.msra.mxu0 0.0
      %787 = vmatpush.msra.mxu0 0.0
      %788 = vmatpush.msra.mxu0 0.0
      %789 = vmatpush.msra.mxu0 0.0
      %790 = vmatpush.msra.mxu0 0.0
      %791 = vmatpush.msra.mxu0 0.0
      %792 = vmatpush.msra.mxu0 0.0
      %793 = vmatpush.msra.mxu0 0.0
      %794 = vmatpush.msra.mxu0 0.0
      %795 = vmatpush.msra.mxu0 %v778
      %796 = vmatmul.f32.gmra.mxu0 %v566
      %v797 = vpop.f32.mrf.mxu0
      %v798 = vadd.f32 0.0, %v797
      %799 = vdwg.mxu0
      %v800 = vadd.f32 %v548, %v588
      %v801 = vadd.f32 %v549, %v618
      %v802 = vadd.f32 %v550, %v648
      %v803 = vadd.f32 %v551, %v678
      %v804 = vadd.f32 %v552, %v708
      %v805 = vadd.f32 %v553, %v738
      %v806 = vadd.f32 %v554, %v768
      %v807 = vadd.f32 %v555, %v798
      %808 = vst [vmem:[#allocation3] sm:$0xff] %v800
      %809 = vst [vmem:[#allocation3 + $0x8] sm:$0xff] %v801
      %810 = vst [vmem:[#allocation3 + $0x10] sm:$0xff] %v802
      %811 = vst [vmem:[#allocation3 + $0x18] sm:$0xff] %v803
      %812 = vst [vmem:[#allocation3 + $0x20] sm:$0xff] %v804
      %813 = vst [vmem:[#allocation3 + $0x28] sm:$0xff] %v805
      %814 = vst [vmem:[#allocation3 + $0x30] sm:$0xff] %v806
      %815 = vst [vmem:[#allocation3 + $0x38] sm:$0xff] %v807
      %s816 = scalar_lea.vmem %s2, 16
      %v817 = vld [vmem:[%s816] sm:$0xff]
      %v818 = vld [vmem:[#allocation3] sm:$0xff]
      %v819 = vld [vmem:[#allocation3 + $0x8] sm:$0xff]
      %v820 = vld [vmem:[#allocation3 + $0x10] sm:$0xff]
      %v821 = vld [vmem:[#allocation3 + $0x18] sm:$0xff]
      %v822 = vld [vmem:[#allocation3 + $0x20] sm:$0xff]
      %v823 = vld [vmem:[#allocation3 + $0x28] sm:$0xff]
      %v824 = vld [vmem:[#allocation3 + $0x30] sm:$0xff]
      %v825 = vld [vmem:[#allocation3 + $0x38] sm:$0xff]
      %826 = vst [vmem:[#allocation1] ss:$2 sm:$0xff] %v325
      %v827 = vld.sshfl [vmem:[#allocation1] sm:$0xff pattern:$0x75316420]
      %v828 = vld.sshfl [vmem:[#allocation1 + $0x8] sm:$0xff pattern:$0x75316420]
      %829 = vrot.lane.b32.xlu0 %v827, 126
      %v830 = vpop.permute.xlu0 %829
      %831 = vrot.lane.b32.xlu0 %v828, 126
      %v832 = vpop.permute.xlu0 %831
      %vm833 = vcmask 1031168
      %v834 = vsel %vm833, %v830, %v832
      %v836 = vsel %vm342, %v817, 0
      %v838 = vsel %vm301, %v834, 0
      %840 = vmatpush.msra.mxu0 0.0
      %841 = vmatpush.msra.mxu0 0.0
      %842 = vmatpush.msra.mxu0 0.0
      %843 = vmatpush.msra.mxu0 0.0
      %844 = vmatpush.msra.mxu0 0.0
      %845 = vmatpush.msra.mxu0 0.0
      %846 = vmatpush.msra.mxu0 0.0
      %847 = vmatpush.msra.mxu0 0.0
      %848 = vmatpush.msra.mxu0 0.0
      %849 = vmatpush.msra.mxu0 0.0
      %850 = vmatpush.msra.mxu0 0.0
      %851 = vmatpush.msra.mxu0 0.0
      %852 = vmatpush.msra.mxu0 0.0
      %853 = vmatpush.msra.mxu0 0.0
      %854 = vmatpush.msra.mxu0 0.0
      %855 = vmatpush.msra.mxu0 %v838
      %856 = vmatmul.f32.gmra.mxu0 %v836
      %v857 = vpop.f32.mrf.mxu0
      %v858 = vadd.f32 0.0, %v857
      %859 = vdwg.mxu0
      %860 = vst [vmem:[#allocation1] ss:$2 sm:$0xff] %v326
      %v861 = vld.sshfl [vmem:[#allocation1] sm:$0xff pattern:$0x75316420]
      %v862 = vld.sshfl [vmem:[#allocation1 + $0x8] sm:$0xff pattern:$0x75316420]
      %863 = vrot.lane.b32.xlu0 %v861, 126
      %v864 = vpop.permute.xlu0 %863
      %865 = vrot.lane.b32.xlu0 %v862, 126
      %v866 = vpop.permute.xlu0 %865
      %v867 = vsel %vm833, %v864, %v866
      %v868 = vsel %vm301, %v867, 0
      %870 = vmatpush.msra.mxu0 0.0
      %871 = vmatpush.msra.mxu0 0.0
      %872 = vmatpush.msra.mxu0 0.0
      %873 = vmatpush.msra.mxu0 0.0
      %874 = vmatpush.msra.mxu0 0.0
      %875 = vmatpush.msra.mxu0 0.0
      %876 = vmatpush.msra.mxu0 0.0
      %877 = vmatpush.msra.mxu0 0.0
      %878 = vmatpush.msra.mxu0 0.0
      %879 = vmatpush.msra.mxu0 0.0
      %880 = vmatpush.msra.mxu0 0.0
      %881 = vmatpush.msra.mxu0 0.0
      %882 = vmatpush.msra.mxu0 0.0
      %883 = vmatpush.msra.mxu0 0.0
      %884 = vmatpush.msra.mxu0 0.0
      %885 = vmatpush.msra.mxu0 %v868
      %886 = vmatmul.f32.gmra.mxu0 %v836
      %v887 = vpop.f32.mrf.mxu0
      %v888 = vadd.f32 0.0, %v887
      %889 = vdwg.mxu0
      %890 = vst [vmem:[#allocation1] ss:$2 sm:$0xff] %v327
      %v891 = vld.sshfl [vmem:[#allocation1] sm:$0xff pattern:$0x75316420]
      %v892 = vld.sshfl [vmem:[#allocation1 + $0x8] sm:$0xff pattern:$0x75316420]
      %893 = vrot.lane.b32.xlu0 %v891, 126
      %v894 = vpop.permute.xlu0 %893
      %895 = vrot.lane.b32.xlu0 %v892, 126
      %v896 = vpop.permute.xlu0 %895
      %v897 = vsel %vm833, %v894, %v896
      %v898 = vsel %vm301, %v897, 0
      %900 = vmatpush.msra.mxu0 0.0
      %901 = vmatpush.msra.mxu0 0.0
      %902 = vmatpush.msra.mxu0 0.0
      %903 = vmatpush.msra.mxu0 0.0
      %904 = vmatpush.msra.mxu0 0.0
      %905 = vmatpush.msra.mxu0 0.0
      %906 = vmatpush.msra.mxu0 0.0
      %907 = vmatpush.msra.mxu0 0.0
      %908 = vmatpush.msra.mxu0 0.0
      %909 = vmatpush.msra.mxu0 0.0
      %910 = vmatpush.msra.mxu0 0.0
      %911 = vmatpush.msra.mxu0 0.0
      %912 = vmatpush.msra.mxu0 0.0
      %913 = vmatpush.msra.mxu0 0.0
      %914 = vmatpush.msra.mxu0 0.0
      %915 = vmatpush.msra.mxu0 %v898
      %916 = vmatmul.f32.gmra.mxu0 %v836
      %v917 = vpop.f32.mrf.mxu0
      %v918 = vadd.f32 0.0, %v917
      %919 = vdwg.mxu0
      %920 = vst [vmem:[#allocation1] ss:$2 sm:$0xff] %v328
      %v921 = vld.sshfl [vmem:[#allocation1] sm:$0xff pattern:$0x75316420]
      %v922 = vld.sshfl [vmem:[#allocation1 + $0x8] sm:$0xff pattern:$0x75316420]
      %923 = vrot.lane.b32.xlu0 %v921, 126
      %v924 = vpop.permute.xlu0 %923
      %925 = vrot.lane.b32.xlu0 %v922, 126
      %v926 = vpop.permute.xlu0 %925
      %v927 = vsel %vm833, %v924, %v926
      %v928 = vsel %vm301, %v927, 0
      %930 = vmatpush.msra.mxu0 0.0
      %931 = vmatpush.msra.mxu0 0.0
      %932 = vmatpush.msra.mxu0 0.0
      %933 = vmatpush.msra.mxu0 0.0
      %934 = vmatpush.msra.mxu0 0.0
      %935 = vmatpush.msra.mxu0 0.0
      %936 = vmatpush.msra.mxu0 0.0
      %937 = vmatpush.msra.mxu0 0.0
      %938 = vmatpush.msra.mxu0 0.0
      %939 = vmatpush.msra.mxu0 0.0
      %940 = vmatpush.msra.mxu0 0.0
      %941 = vmatpush.msra.mxu0 0.0
      %942 = vmatpush.msra.mxu0 0.0
      %943 = vmatpush.msra.mxu0 0.0
      %944 = vmatpush.msra.mxu0 0.0
      %945 = vmatpush.msra.mxu0 %v928
      %946 = vmatmul.f32.gmra.mxu0 %v836
      %v947 = vpop.f32.mrf.mxu0
      %v948 = vadd.f32 0.0, %v947
      %949 = vdwg.mxu0
      %950 = vst [vmem:[#allocation1] ss:$2 sm:$0xff] %v329
      %v951 = vld.sshfl [vmem:[#allocation1] sm:$0xff pattern:$0x75316420]
      %v952 = vld.sshfl [vmem:[#allocation1 + $0x8] sm:$0xff pattern:$0x75316420]
      %953 = vrot.lane.b32.xlu0 %v951, 126
      %v954 = vpop.permute.xlu0 %953
      %955 = vrot.lane.b32.xlu0 %v952, 126
      %v956 = vpop.permute.xlu0 %955
      %v957 = vsel %vm833, %v954, %v956
      %v958 = vsel %vm301, %v957, 0
      %960 = vmatpush.msra.mxu0 0.0
      %961 = vmatpush.msra.mxu0 0.0
      %962 = vmatpush.msra.mxu0 0.0
      %963 = vmatpush.msra.mxu0 0.0
      %964 = vmatpush.msra.mxu0 0.0
      %965 = vmatpush.msra.mxu0 0.0
      %966 = vmatpush.msra.mxu0 0.0
      %967 = vmatpush.msra.mxu0 0.0
      %968 = vmatpush.msra.mxu0 0.0
      %969 = vmatpush.msra.mxu0 0.0
      %970 = vmatpush.msra.mxu0 0.0
      %971 = vmatpush.msra.mxu0 0.0
      %972 = vmatpush.msra.mxu0 0.0
      %973 = vmatpush.msra.mxu0 0.0
      %974 = vmatpush.msra.mxu0 0.0
      %975 = vmatpush.msra.mxu0 %v958
      %976 = vmatmul.f32.gmra.mxu0 %v836
      %v977 = vpop.f32.mrf.mxu0
      %v978 = vadd.f32 0.0, %v977
      %979 = vdwg.mxu0
      %980 = vst [vmem:[#allocation1] ss:$2 sm:$0xff] %v330
      %v981 = vld.sshfl [vmem:[#allocation1] sm:$0xff pattern:$0x75316420]
      %v982 = vld.sshfl [vmem:[#allocation1 + $0x8] sm:$0xff pattern:$0x75316420]
      %983 = vrot.lane.b32.xlu0 %v981, 126
      %v984 = vpop.permute.xlu0 %983
      %985 = vrot.lane.b32.xlu0 %v982, 126
      %v986 = vpop.permute.xlu0 %985
      %v987 = vsel %vm833, %v984, %v986
      %v988 = vsel %vm301, %v987, 0
      %990 = vmatpush.msra.mxu0 0.0
      %991 = vmatpush.msra.mxu0 0.0
      %992 = vmatpush.msra.mxu0 0.0
      %993 = vmatpush.msra.mxu0 0.0
      %994 = vmatpush.msra.mxu0 0.0
      %995 = vmatpush.msra.mxu0 0.0
      %996 = vmatpush.msra.mxu0 0.0
      %997 = vmatpush.msra.mxu0 0.0
      %998 = vmatpush.msra.mxu0 0.0
      %999 = vmatpush.msra.mxu0 0.0
      %1000 = vmatpush.msra.mxu0 0.0
      %1001 = vmatpush.msra.mxu0 0.0
      %1002 = vmatpush.msra.mxu0 0.0
      %1003 = vmatpush.msra.mxu0 0.0
      %1004 = vmatpush.msra.mxu0 0.0
      %1005 = vmatpush.msra.mxu0 %v988
      %1006 = vmatmul.f32.gmra.mxu0 %v836
      %v1007 = vpop.f32.mrf.mxu0
      %v1008 = vadd.f32 0.0, %v1007
      %1009 = vdwg.mxu0
      %1010 = vst [vmem:[#allocation1] ss:$2 sm:$0xff] %v331
      %v1011 = vld.sshfl [vmem:[#allocation1] sm:$0xff pattern:$0x75316420]
      %v1012 = vld.sshfl [vmem:[#allocation1 + $0x8] sm:$0xff pattern:$0x75316420]
      %1013 = vrot.lane.b32.xlu0 %v1011, 126
      %v1014 = vpop.permute.xlu0 %1013
      %1015 = vrot.lane.b32.xlu0 %v1012, 126
      %v1016 = vpop.permute.xlu0 %1015
      %v1017 = vsel %vm833, %v1014, %v1016
      %v1018 = vsel %vm301, %v1017, 0
      %1020 = vmatpush.msra.mxu0 0.0
      %1021 = vmatpush.msra.mxu0 0.0
      %1022 = vmatpush.msra.mxu0 0.0
      %1023 = vmatpush.msra.mxu0 0.0
      %1024 = vmatpush.msra.mxu0 0.0
      %1025 = vmatpush.msra.mxu0 0.0
      %1026 = vmatpush.msra.mxu0 0.0
      %1027 = vmatpush.msra.mxu0 0.0
      %1028 = vmatpush.msra.mxu0 0.0
      %1029 = vmatpush.msra.mxu0 0.0
      %1030 = vmatpush.msra.mxu0 0.0
      %1031 = vmatpush.msra.mxu0 0.0
      %1032 = vmatpush.msra.mxu0 0.0
      %1033 = vmatpush.msra.mxu0 0.0
      %1034 = vmatpush.msra.mxu0 0.0
      %1035 = vmatpush.msra.mxu0 %v1018
      %1036 = vmatmul.f32.gmra.mxu0 %v836
      %v1037 = vpop.f32.mrf.mxu0
      %v1038 = vadd.f32 0.0, %v1037
      %1039 = vdwg.mxu0
      %1040 = vst [vmem:[#allocation1] ss:$2 sm:$0xff] %v332
      %v1041 = vld.sshfl [vmem:[#allocation1] sm:$0xff pattern:$0x75316420]
      %v1042 = vld.sshfl [vmem:[#allocation1 + $0x8] sm:$0xff pattern:$0x75316420]
      %1043 = vrot.lane.b32.xlu0 %v1041, 126
      %v1044 = vpop.permute.xlu0 %1043
      %1045 = vrot.lane.b32.xlu0 %v1042, 126
      %v1046 = vpop.permute.xlu0 %1045
      %v1047 = vsel %vm833, %v1044, %v1046
      %v1048 = vsel %vm301, %v1047, 0
      %1050 = vmatpush.msra.mxu0 0.0
      %1051 = vmatpush.msra.mxu0 0.0
      %1052 = vmatpush.msra.mxu0 0.0
      %1053 = vmatpush.msra.mxu0 0.0
      %1054 = vmatpush.msra.mxu0 0.0
      %1055 = vmatpush.msra.mxu0 0.0
      %1056 = vmatpush.msra.mxu0 0.0
      %1057 = vmatpush.msra.mxu0 0.0
      %1058 = vmatpush.msra.mxu0 0.0
      %1059 = vmatpush.msra.mxu0 0.0
      %1060 = vmatpush.msra.mxu0 0.0
      %1061 = vmatpush.msra.mxu0 0.0
      %1062 = vmatpush.msra.mxu0 0.0
      %1063 = vmatpush.msra.mxu0 0.0
      %1064 = vmatpush.msra.mxu0 0.0
      %1065 = vmatpush.msra.mxu0 %v1048
      %1066 = vmatmul.f32.gmra.mxu0 %v836
      %v1067 = vpop.f32.mrf.mxu0
      %v1068 = vadd.f32 0.0, %v1067
      %1069 = vdwg.mxu0
      %v1070 = vadd.f32 %v818, %v858
      %v1071 = vadd.f32 %v819, %v888
      %v1072 = vadd.f32 %v820, %v918
      %v1073 = vadd.f32 %v821, %v948
      %v1074 = vadd.f32 %v822, %v978
      %v1075 = vadd.f32 %v823, %v1008
      %v1076 = vadd.f32 %v824, %v1038
      %v1077 = vadd.f32 %v825, %v1068
      %1078 = vst [vmem:[#allocation3] sm:$0xff] %v1070
      %1079 = vst [vmem:[#allocation3 + $0x8] sm:$0xff] %v1071
      %1080 = vst [vmem:[#allocation3 + $0x10] sm:$0xff] %v1072
      %1081 = vst [vmem:[#allocation3 + $0x18] sm:$0xff] %v1073
      %1082 = vst [vmem:[#allocation3 + $0x20] sm:$0xff] %v1074
      %1083 = vst [vmem:[#allocation3 + $0x28] sm:$0xff] %v1075
      %1084 = vst [vmem:[#allocation3 + $0x30] sm:$0xff] %v1076
      %1085 = vst [vmem:[#allocation3 + $0x38] sm:$0xff] %v1077
      %s1086 = scalar_lea.vmem [#allocation2], 8
      %v1087 = vld [vmem:[%s1086] sm:$0xff]
      %v1088 = vld [vmem:[%s1086 + $0x8] sm:$0xff]
      %v1089 = vld [vmem:[%s1086 + $0x10] sm:$0xff]
      %v1090 = vld [vmem:[%s1086 + $0x18] sm:$0xff]
      %v1091 = vld [vmem:[%s1086 + $0x20] sm:$0xff]
      %v1092 = vld [vmem:[%s1086 + $0x28] sm:$0xff]
      %v1093 = vld [vmem:[%s1086 + $0x30] sm:$0xff]
      %v1094 = vld [vmem:[%s1086 + $0x38] sm:$0xff]
      %s1095 = scalar_lea.vmem %s2, 24
      %v1096 = vld [vmem:[%s1095] sm:$0xff]
      %v1097 = vld [vmem:[#allocation3] sm:$0xff]
      %v1098 = vld [vmem:[#allocation3 + $0x8] sm:$0xff]
      %v1099 = vld [vmem:[#allocation3 + $0x10] sm:$0xff]
      %v1100 = vld [vmem:[#allocation3 + $0x18] sm:$0xff]
      %v1101 = vld [vmem:[#allocation3 + $0x20] sm:$0xff]
      %v1102 = vld [vmem:[#allocation3 + $0x28] sm:$0xff]
      %v1103 = vld [vmem:[#allocation3 + $0x30] sm:$0xff]
      %v1104 = vld [vmem:[#allocation3 + $0x38] sm:$0xff]
      %v1106 = vsel %vm342, %v1096, 0
      %v1109 = vsel %vm301, %v1087, 0
      %1111 = vmatpush.msra.mxu0 0.0
      %1112 = vmatpush.msra.mxu0 0.0
      %1113 = vmatpush.msra.mxu0 0.0
      %1114 = vmatpush.msra.mxu0 0.0
      %1115 = vmatpush.msra.mxu0 0.0
      %1116 = vmatpush.msra.mxu0 0.0
      %1117 = vmatpush.msra.mxu0 0.0
      %1118 = vmatpush.msra.mxu0 0.0
      %1119 = vmatpush.msra.mxu0 0.0
      %1120 = vmatpush.msra.mxu0 0.0
      %1121 = vmatpush.msra.mxu0 0.0
      %1122 = vmatpush.msra.mxu0 0.0
      %1123 = vmatpush.msra.mxu0 0.0
      %1124 = vmatpush.msra.mxu0 0.0
      %1125 = vmatpush.msra.mxu0 0.0
      %1126 = vmatpush.msra.mxu0 %v1109
      %1127 = vmatmul.f32.gmra.mxu0 %v1106
      %v1128 = vpop.f32.mrf.mxu0
      %v1129 = vadd.f32 0.0, %v1128
      %1130 = vdwg.mxu0
      %v1132 = vsel %vm301, %v1088, 0
      %1134 = vmatpush.msra.mxu0 0.0
      %1135 = vmatpush.msra.mxu0 0.0
      %1136 = vmatpush.msra.mxu0 0.0
      %1137 = vmatpush.msra.mxu0 0.0
      %1138 = vmatpush.msra.mxu0 0.0
      %1139 = vmatpush.msra.mxu0 0.0
      %1140 = vmatpush.msra.mxu0 0.0
      %1141 = vmatpush.msra.mxu0 0.0
      %1142 = vmatpush.msra.mxu0 0.0
      %1143 = vmatpush.msra.mxu0 0.0
      %1144 = vmatpush.msra.mxu0 0.0
      %1145 = vmatpush.msra.mxu0 0.0
      %1146 = vmatpush.msra.mxu0 0.0
      %1147 = vmatpush.msra.mxu0 0.0
      %1148 = vmatpush.msra.mxu0 0.0
      %1149 = vmatpush.msra.mxu0 %v1132
      %1150 = vmatmul.f32.gmra.mxu0 %v1106
      %v1151 = vpop.f32.mrf.mxu0
      %v1152 = vadd.f32 0.0, %v1151
      %1153 = vdwg.mxu0
      %v1155 = vsel %vm301, %v1089, 0
      %1157 = vmatpush.msra.mxu0 0.0
      %1158 = vmatpush.msra.mxu0 0.0
      %1159 = vmatpush.msra.mxu0 0.0
      %1160 = vmatpush.msra.mxu0 0.0
      %1161 = vmatpush.msra.mxu0 0.0
      %1162 = vmatpush.msra.mxu0 0.0
      %1163 = vmatpush.msra.mxu0 0.0
      %1164 = vmatpush.msra.mxu0 0.0
      %1165 = vmatpush.msra.mxu0 0.0
      %1166 = vmatpush.msra.mxu0 0.0
      %1167 = vmatpush.msra.mxu0 0.0
      %1168 = vmatpush.msra.mxu0 0.0
      %1169 = vmatpush.msra.mxu0 0.0
      %1170 = vmatpush.msra.mxu0 0.0
      %1171 = vmatpush.msra.mxu0 0.0
      %1172 = vmatpush.msra.mxu0 %v1155
      %1173 = vmatmul.f32.gmra.mxu0 %v1106
      %v1174 = vpop.f32.mrf.mxu0
      %v1175 = vadd.f32 0.0, %v1174
      %1176 = vdwg.mxu0
      %v1178 = vsel %vm301, %v1090, 0
      %1180 = vmatpush.msra.mxu0 0.0
      %1181 = vmatpush.msra.mxu0 0.0
      %1182 = vmatpush.msra.mxu0 0.0
      %1183 = vmatpush.msra.mxu0 0.0
      %1184 = vmatpush.msra.mxu0 0.0
      %1185 = vmatpush.msra.mxu0 0.0
      %1186 = vmatpush.msra.mxu0 0.0
      %1187 = vmatpush.msra.mxu0 0.0
      %1188 = vmatpush.msra.mxu0 0.0
      %1189 = vmatpush.msra.mxu0 0.0
      %1190 = vmatpush.msra.mxu0 0.0
      %1191 = vmatpush.msra.mxu0 0.0
      %1192 = vmatpush.msra.mxu0 0.0
      %1193 = vmatpush.msra.mxu0 0.0
      %1194 = vmatpush.msra.mxu0 0.0
      %1195 = vmatpush.msra.mxu0 %v1178
      %1196 = vmatmul.f32.gmra.mxu0 %v1106
      %v1197 = vpop.f32.mrf.mxu0
      %v1198 = vadd.f32 0.0, %v1197
      %1199 = vdwg.mxu0
      %v1201 = vsel %vm301, %v1091, 0
      %1203 = vmatpush.msra.mxu0 0.0
      %1204 = vmatpush.msra.mxu0 0.0
      %1205 = vmatpush.msra.mxu0 0.0
      %1206 = vmatpush.msra.mxu0 0.0
      %1207 = vmatpush.msra.mxu0 0.0
      %1208 = vmatpush.msra.mxu0 0.0
      %1209 = vmatpush.msra.mxu0 0.0
      %1210 = vmatpush.msra.mxu0 0.0
      %1211 = vmatpush.msra.mxu0 0.0
      %1212 = vmatpush.msra.mxu0 0.0
      %1213 = vmatpush.msra.mxu0 0.0
      %1214 = vmatpush.msra.mxu0 0.0
      %1215 = vmatpush.msra.mxu0 0.0
      %1216 = vmatpush.msra.mxu0 0.0
      %1217 = vmatpush.msra.mxu0 0.0
      %1218 = vmatpush.msra.mxu0 %v1201
      %1219 = vmatmul.f32.gmra.mxu0 %v1106
      %v1220 = vpop.f32.mrf.mxu0
      %v1221 = vadd.f32 0.0, %v1220
      %1222 = vdwg.mxu0
      %v1224 = vsel %vm301, %v1092, 0
      %1226 = vmatpush.msra.mxu0 0.0
      %1227 = vmatpush.msra.mxu0 0.0
      %1228 = vmatpush.msra.mxu0 0.0
      %1229 = vmatpush.msra.mxu0 0.0
      %1230 = vmatpush.msra.mxu0 0.0
      %1231 = vmatpush.msra.mxu0 0.0
      %1232 = vmatpush.msra.mxu0 0.0
      %1233 = vmatpush.msra.mxu0 0.0
      %1234 = vmatpush.msra.mxu0 0.0
      %1235 = vmatpush.msra.mxu0 0.0
      %1236 = vmatpush.msra.mxu0 0.0
      %1237 = vmatpush.msra.mxu0 0.0
      %1238 = vmatpush.msra.mxu0 0.0
      %1239 = vmatpush.msra.mxu0 0.0
      %1240 = vmatpush.msra.mxu0 0.0
      %1241 = vmatpush.msra.mxu0 %v1224
      %1242 = vmatmul.f32.gmra.mxu0 %v1106
      %v1243 = vpop.f32.mrf.mxu0
      %v1244 = vadd.f32 0.0, %v1243
      %1245 = vdwg.mxu0
      %v1247 = vsel %vm301, %v1093, 0
      %1249 = vmatpush.msra.mxu0 0.0
      %1250 = vmatpush.msra.mxu0 0.0
      %1251 = vmatpush.msra.mxu0 0.0
      %1252 = vmatpush.msra.mxu0 0.0
      %1253 = vmatpush.msra.mxu0 0.0
      %1254 = vmatpush.msra.mxu0 0.0
      %1255 = vmatpush.msra.mxu0 0.0
      %1256 = vmatpush.msra.mxu0 0.0
      %1257 = vmatpush.msra.mxu0 0.0
      %1258 = vmatpush.msra.mxu0 0.0
      %1259 = vmatpush.msra.mxu0 0.0
      %1260 = vmatpush.msra.mxu0 0.0
      %1261 = vmatpush.msra.mxu0 0.0
      %1262 = vmatpush.msra.mxu0 0.0
      %1263 = vmatpush.msra.mxu0 0.0
      %1264 = vmatpush.msra.mxu0 %v1247
      %1265 = vmatmul.f32.gmra.mxu0 %v1106
      %v1266 = vpop.f32.mrf.mxu0
      %v1267 = vadd.f32 0.0, %v1266
      %1268 = vdwg.mxu0
      %v1270 = vsel %vm301, %v1094, 0
      %1272 = vmatpush.msra.mxu0 0.0
      %1273 = vmatpush.msra.mxu0 0.0
      %1274 = vmatpush.msra.mxu0 0.0
      %1275 = vmatpush.msra.mxu0 0.0
      %1276 = vmatpush.msra.mxu0 0.0
      %1277 = vmatpush.msra.mxu0 0.0
      %1278 = vmatpush.msra.mxu0 0.0
      %1279 = vmatpush.msra.mxu0 0.0
      %1280 = vmatpush.msra.mxu0 0.0
      %1281 = vmatpush.msra.mxu0 0.0
      %1282 = vmatpush.msra.mxu0 0.0
      %1283 = vmatpush.msra.mxu0 0.0
      %1284 = vmatpush.msra.mxu0 0.0
      %1285 = vmatpush.msra.mxu0 0.0
      %1286 = vmatpush.msra.mxu0 0.0
      %1287 = vmatpush.msra.mxu0 %v1270
      %1288 = vmatmul.f32.gmra.mxu0 %v1106
      %v1289 = vpop.f32.mrf.mxu0
      %v1290 = vadd.f32 0.0, %v1289
      %1291 = vdwg.mxu0
      %v1292 = vadd.f32 %v1097, %v1129
      %v1293 = vadd.f32 %v1098, %v1152
      %v1294 = vadd.f32 %v1099, %v1175
      %v1295 = vadd.f32 %v1100, %v1198
      %v1296 = vadd.f32 %v1101, %v1221
      %v1297 = vadd.f32 %v1102, %v1244
      %v1298 = vadd.f32 %v1103, %v1267
      %v1299 = vadd.f32 %v1104, %v1290
      %1300 = vst [vmem:[#allocation3] sm:$0xff] %v1292
      %1301 = vst [vmem:[#allocation3 + $0x8] sm:$0xff] %v1293
      %1302 = vst [vmem:[#allocation3 + $0x10] sm:$0xff] %v1294
      %1303 = vst [vmem:[#allocation3 + $0x18] sm:$0xff] %v1295
      %1304 = vst [vmem:[#allocation3 + $0x20] sm:$0xff] %v1296
      %1305 = vst [vmem:[#allocation3 + $0x28] sm:$0xff] %v1297
      %1306 = vst [vmem:[#allocation3 + $0x30] sm:$0xff] %v1298
      %1307 = vst [vmem:[#allocation3 + $0x38] sm:$0xff] %v1299
      %s1308 = scalar_lea.vmem %s2, 32
      %v1309 = vld [vmem:[%s1308] sm:$0xff]
      %v1310 = vld [vmem:[#allocation3] sm:$0xff]
      %v1311 = vld [vmem:[#allocation3 + $0x8] sm:$0xff]
      %v1312 = vld [vmem:[#allocation3 + $0x10] sm:$0xff]
      %v1313 = vld [vmem:[#allocation3 + $0x18] sm:$0xff]
      %v1314 = vld [vmem:[#allocation3 + $0x20] sm:$0xff]
      %v1315 = vld [vmem:[#allocation3 + $0x28] sm:$0xff]
      %v1316 = vld [vmem:[#allocation3 + $0x30] sm:$0xff]
      %v1317 = vld [vmem:[#allocation3 + $0x38] sm:$0xff]
      %1318 = vst [vmem:[#allocation1] ss:$2 sm:$0xff] %v1087
      %v1319 = vld.sshfl [vmem:[#allocation1] sm:$0xff pattern:$0x75316420]
      %v1320 = vld.sshfl [vmem:[#allocation1 + $0x8] sm:$0xff pattern:$0x75316420]
      %1321 = vrot.lane.b32.xlu0 %v1319, 127
      %v1322 = vpop.permute.xlu0 %1321
      %1323 = vrot.lane.b32.xlu0 %v1320, 127
      %v1324 = vpop.permute.xlu0 %1323
      %v1325 = vsel %vm563, %v1322, %v1324
      %v1327 = vsel %vm342, %v1309, 0
      %v1329 = vsel %vm301, %v1325, 0
      %1331 = vmatpush.msra.mxu0 0.0
      %1332 = vmatpush.msra.mxu0 0.0
      %1333 = vmatpush.msra.mxu0 0.0
      %1334 = vmatpush.msra.mxu0 0.0
      %1335 = vmatpush.msra.mxu0 0.0
      %1336 = vmatpush.msra.mxu0 0.0
      %1337 = vmatpush.msra.mxu0 0.0
      %1338 = vmatpush.msra.mxu0 0.0
      %1339 = vmatpush.msra.mxu0 0.0
      %1340 = vmatpush.msra.mxu0 0.0
      %1341 = vmatpush.msra.mxu0 0.0
      %1342 = vmatpush.msra.mxu0 0.0
      %1343 = vmatpush.msra.mxu0 0.0
      %1344 = vmatpush.msra.mxu0 0.0
      %1345 = vmatpush.msra.mxu0 0.0
      %1346 = vmatpush.msra.mxu0 %v1329
      %1347 = vmatmul.f32.gmra.mxu0 %v1327
      %v1348 = vpop.f32.mrf.mxu0
      %v1349 = vadd.f32 0.0, %v1348
      %1350 = vdwg.mxu0
      %1351 = vst [vmem:[#allocation1] ss:$2 sm:$0xff] %v1088
      %v1352 = vld.sshfl [vmem:[#allocation1] sm:$0xff pattern:$0x75316420]
      %v1353 = vld.sshfl [vmem:[#allocation1 + $0x8] sm:$0xff pattern:$0x75316420]
      %1354 = vrot.lane.b32.xlu0 %v1352, 127
      %v1355 = vpop.permute.xlu0 %1354
      %1356 = vrot.lane.b32.xlu0 %v1353, 127
      %v1357 = vpop.permute.xlu0 %1356
      %v1358 = vsel %vm563, %v1355, %v1357
      %v1359 = vsel %vm301, %v1358, 0
      %1361 = vmatpush.msra.mxu0 0.0
      %1362 = vmatpush.msra.mxu0 0.0
      %1363 = vmatpush.msra.mxu0 0.0
      %1364 = vmatpush.msra.mxu0 0.0
      %1365 = vmatpush.msra.mxu0 0.0
      %1366 = vmatpush.msra.mxu0 0.0
      %1367 = vmatpush.msra.mxu0 0.0
      %1368 = vmatpush.msra.mxu0 0.0
      %1369 = vmatpush.msra.mxu0 0.0
      %1370 = vmatpush.msra.mxu0 0.0
      %1371 = vmatpush.msra.mxu0 0.0
      %1372 = vmatpush.msra.mxu0 0.0
      %1373 = vmatpush.msra.mxu0 0.0
      %1374 = vmatpush.msra.mxu0 0.0
      %1375 = vmatpush.msra.mxu0 0.0
      %1376 = vmatpush.msra.mxu0 %v1359
      %1377 = vmatmul.f32.gmra.mxu0 %v1327
      %v1378 = vpop.f32.mrf.mxu0
      %v1379 = vadd.f32 0.0, %v1378
      %1380 = vdwg.mxu0
      %1381 = vst [vmem:[#allocation1] ss:$2 sm:$0xff] %v1089
      %v1382 = vld.sshfl [vmem:[#allocation1] sm:$0xff pattern:$0x75316420]
      %v1383 = vld.sshfl [vmem:[#allocation1 + $0x8] sm:$0xff pattern:$0x75316420]
      %1384 = vrot.lane.b32.xlu0 %v1382, 127
      %v1385 = vpop.permute.xlu0 %1384
      %1386 = vrot.lane.b32.xlu0 %v1383, 127
      %v1387 = vpop.permute.xlu0 %1386
      %v1388 = vsel %vm563, %v1385, %v1387
      %v1389 = vsel %vm301, %v1388, 0
      %1391 = vmatpush.msra.mxu0 0.0
      %1392 = vmatpush.msra.mxu0 0.0
      %1393 = vmatpush.msra.mxu0 0.0
      %1394 = vmatpush.msra.mxu0 0.0
      %1395 = vmatpush.msra.mxu0 0.0
      %1396 = vmatpush.msra.mxu0 0.0
      %1397 = vmatpush.msra.mxu0 0.0
      %1398 = vmatpush.msra.mxu0 0.0
      %1399 = vmatpush.msra.mxu0 0.0
      %1400 = vmatpush.msra.mxu0 0.0
      %1401 = vmatpush.msra.mxu0 0.0
      %1402 = vmatpush.msra.mxu0 0.0
      %1403 = vmatpush.msra.mxu0 0.0
      %1404 = vmatpush.msra.mxu0 0.0
      %1405 = vmatpush.msra.mxu0 0.0
      %1406 = vmatpush.msra.mxu0 %v1389
      %1407 = vmatmul.f32.gmra.mxu0 %v1327
      %v1408 = vpop.f32.mrf.mxu0
      %v1409 = vadd.f32 0.0, %v1408
      %1410 = vdwg.mxu0
      %1411 = vst [vmem:[#allocation1] ss:$2 sm:$0xff] %v1090
      %v1412 = vld.sshfl [vmem:[#allocation1] sm:$0xff pattern:$0x75316420]
      %v1413 = vld.sshfl [vmem:[#allocation1 + $0x8] sm:$0xff pattern:$0x75316420]
      %1414 = vrot.lane.b32.xlu0 %v1412, 127
      %v1415 = vpop.permute.xlu0 %1414
      %1416 = vrot.lane.b32.xlu0 %v1413, 127
      %v1417 = vpop.permute.xlu0 %1416
      %v1418 = vsel %vm563, %v1415, %v1417
      %v1419 = vsel %vm301, %v1418, 0
      %1421 = vmatpush.msra.mxu0 0.0
      %1422 = vmatpush.msra.mxu0 0.0
      %1423 = vmatpush.msra.mxu0 0.0
      %1424 = vmatpush.msra.mxu0 0.0
      %1425 = vmatpush.msra.mxu0 0.0
      %1426 = vmatpush.msra.mxu0 0.0
      %1427 = vmatpush.msra.mxu0 0.0
      %1428 = vmatpush.msra.mxu0 0.0
      %1429 = vmatpush.msra.mxu0 0.0
      %1430 = vmatpush.msra.mxu0 0.0
      %1431 = vmatpush.msra.mxu0 0.0
      %1432 = vmatpush.msra.mxu0 0.0
      %1433 = vmatpush.msra.mxu0 0.0
      %1434 = vmatpush.msra.mxu0 0.0
      %1435 = vmatpush.msra.mxu0 0.0
      %1436 = vmatpush.msra.mxu0 %v1419
      %1437 = vmatmul.f32.gmra.mxu0 %v1327
      %v1438 = vpop.f32.mrf.mxu0
      %v1439 = vadd.f32 0.0, %v1438
      %1440 = vdwg.mxu0
      %1441 = vst [vmem:[#allocation1] ss:$2 sm:$0xff] %v1091
      %v1442 = vld.sshfl [vmem:[#allocation1] sm:$0xff pattern:$0x75316420]
      %v1443 = vld.sshfl [vmem:[#allocation1 + $0x8] sm:$0xff pattern:$0x75316420]
      %1444 = vrot.lane.b32.xlu0 %v1442, 127
      %v1445 = vpop.permute.xlu0 %1444
      %1446 = vrot.lane.b32.xlu0 %v1443, 127
      %v1447 = vpop.permute.xlu0 %1446
      %v1448 = vsel %vm563, %v1445, %v1447
      %v1449 = vsel %vm301, %v1448, 0
      %1451 = vmatpush.msra.mxu0 0.0
      %1452 = vmatpush.msra.mxu0 0.0
      %1453 = vmatpush.msra.mxu0 0.0
      %1454 = vmatpush.msra.mxu0 0.0
      %1455 = vmatpush.msra.mxu0 0.0
      %1456 = vmatpush.msra.mxu0 0.0
      %1457 = vmatpush.msra.mxu0 0.0
      %1458 = vmatpush.msra.mxu0 0.0
      %1459 = vmatpush.msra.mxu0 0.0
      %1460 = vmatpush.msra.mxu0 0.0
      %1461 = vmatpush.msra.mxu0 0.0
      %1462 = vmatpush.msra.mxu0 0.0
      %1463 = vmatpush.msra.mxu0 0.0
      %1464 = vmatpush.msra.mxu0 0.0
      %1465 = vmatpush.msra.mxu0 0.0
      %1466 = vmatpush.msra.mxu0 %v1449
      %1467 = vmatmul.f32.gmra.mxu0 %v1327
      %v1468 = vpop.f32.mrf.mxu0
      %v1469 = vadd.f32 0.0, %v1468
      %1470 = vdwg.mxu0
      %1471 = vst [vmem:[#allocation1] ss:$2 sm:$0xff] %v1092
      %v1472 = vld.sshfl [vmem:[#allocation1] sm:$0xff pattern:$0x75316420]
      %v1473 = vld.sshfl [vmem:[#allocation1 + $0x8] sm:$0xff pattern:$0x75316420]
      %1474 = vrot.lane.b32.xlu0 %v1472, 127
      %v1475 = vpop.permute.xlu0 %1474
      %1476 = vrot.lane.b32.xlu0 %v1473, 127
      %v1477 = vpop.permute.xlu0 %1476
      %v1478 = vsel %vm563, %v1475, %v1477
      %v1479 = vsel %vm301, %v1478, 0
      %1481 = vmatpush.msra.mxu0 0.0
      %1482 = vmatpush.msra.mxu0 0.0
      %1483 = vmatpush.msra.mxu0 0.0
      %1484 = vmatpush.msra.mxu0 0.0
      %1485 = vmatpush.msra.mxu0 0.0
      %1486 = vmatpush.msra.mxu0 0.0
      %1487 = vmatpush.msra.mxu0 0.0
      %1488 = vmatpush.msra.mxu0 0.0
      %1489 = vmatpush.msra.mxu0 0.0
      %1490 = vmatpush.msra.mxu0 0.0
      %1491 = vmatpush.msra.mxu0 0.0
      %1492 = vmatpush.msra.mxu0 0.0
      %1493 = vmatpush.msra.mxu0 0.0
      %1494 = vmatpush.msra.mxu0 0.0
      %1495 = vmatpush.msra.mxu0 0.0
      %1496 = vmatpush.msra.mxu0 %v1479
      %1497 = vmatmul.f32.gmra.mxu0 %v1327
      %v1498 = vpop.f32.mrf.mxu0
      %v1499 = vadd.f32 0.0, %v1498
      %1500 = vdwg.mxu0
      %1501 = vst [vmem:[#allocation1] ss:$2 sm:$0xff] %v1093
      %v1502 = vld.sshfl [vmem:[#allocation1] sm:$0xff pattern:$0x75316420]
      %v1503 = vld.sshfl [vmem:[#allocation1 + $0x8] sm:$0xff pattern:$0x75316420]
      %1504 = vrot.lane.b32.xlu0 %v1502, 127
      %v1505 = vpop.permute.xlu0 %1504
      %1506 = vrot.lane.b32.xlu0 %v1503, 127
      %v1507 = vpop.permute.xlu0 %1506
      %v1508 = vsel %vm563, %v1505, %v1507
      %v1509 = vsel %vm301, %v1508, 0
      %1511 = vmatpush.msra.mxu0 0.0
      %1512 = vmatpush.msra.mxu0 0.0
      %1513 = vmatpush.msra.mxu0 0.0
      %1514 = vmatpush.msra.mxu0 0.0
      %1515 = vmatpush.msra.mxu0 0.0
      %1516 = vmatpush.msra.mxu0 0.0
      %1517 = vmatpush.msra.mxu0 0.0
      %1518 = vmatpush.msra.mxu0 0.0
      %1519 = vmatpush.msra.mxu0 0.0
      %1520 = vmatpush.msra.mxu0 0.0
      %1521 = vmatpush.msra.mxu0 0.0
      %1522 = vmatpush.msra.mxu0 0.0
      %1523 = vmatpush.msra.mxu0 0.0
      %1524 = vmatpush.msra.mxu0 0.0
      %1525 = vmatpush.msra.mxu0 0.0
      %1526 = vmatpush.msra.mxu0 %v1509
      %1527 = vmatmul.f32.gmra.mxu0 %v1327
      %v1528 = vpop.f32.mrf.mxu0
      %v1529 = vadd.f32 0.0, %v1528
      %1530 = vdwg.mxu0
      %1531 = vst [vmem:[#allocation1] ss:$2 sm:$0xff] %v1094
      %v1532 = vld.sshfl [vmem:[#allocation1] sm:$0xff pattern:$0x75316420]
      %v1533 = vld.sshfl [vmem:[#allocation1 + $0x8] sm:$0xff pattern:$0x75316420]
      %1534 = vrot.lane.b32.xlu0 %v1532, 127
      %v1535 = vpop.permute.xlu0 %1534
      %1536 = vrot.lane.b32.xlu0 %v1533, 127
      %v1537 = vpop.permute.xlu0 %1536
      %v1538 = vsel %vm563, %v1535, %v1537
      %v1539 = vsel %vm301, %v1538, 0
      %1541 = vmatpush.msra.mxu0 0.0
      %1542 = vmatpush.msra.mxu0 0.0
      %1543 = vmatpush.msra.mxu0 0.0
      %1544 = vmatpush.msra.mxu0 0.0
      %1545 = vmatpush.msra.mxu0 0.0
      %1546 = vmatpush.msra.mxu0 0.0
      %1547 = vmatpush.msra.mxu0 0.0
      %1548 = vmatpush.msra.mxu0 0.0
      %1549 = vmatpush.msra.mxu0 0.0
      %1550 = vmatpush.msra.mxu0 0.0
      %1551 = vmatpush.msra.mxu0 0.0
      %1552 = vmatpush.msra.mxu0 0.0
      %1553 = vmatpush.msra.mxu0 0.0
      %1554 = vmatpush.msra.mxu0 0.0
      %1555 = vmatpush.msra.mxu0 0.0
      %1556 = vmatpush.msra.mxu0 %v1539
      %1557 = vmatmul.f32.gmra.mxu0 %v1327
      %v1558 = vpop.f32.mrf.mxu0
      %v1559 = vadd.f32 0.0, %v1558
      %1560 = vdwg.mxu0
      %v1561 = vadd.f32 %v1310, %v1349
      %v1562 = vadd.f32 %v1311, %v1379
      %v1563 = vadd.f32 %v1312, %v1409
      %v1564 = vadd.f32 %v1313, %v1439
      %v1565 = vadd.f32 %v1314, %v1469
      %v1566 = vadd.f32 %v1315, %v1499
      %v1567 = vadd.f32 %v1316, %v1529
      %v1568 = vadd.f32 %v1317, %v1559
      %1569 = vst [vmem:[#allocation3] sm:$0xff] %v1561
      %1570 = vst [vmem:[#allocation3 + $0x8] sm:$0xff] %v1562
      %1571 = vst [vmem:[#allocation3 + $0x10] sm:$0xff] %v1563
      %1572 = vst [vmem:[#allocation3 + $0x18] sm:$0xff] %v1564
      %1573 = vst [vmem:[#allocation3 + $0x20] sm:$0xff] %v1565
      %1574 = vst [vmem:[#allocation3 + $0x28] sm:$0xff] %v1566
      %1575 = vst [vmem:[#allocation3 + $0x30] sm:$0xff] %v1567
      %1576 = vst [vmem:[#allocation3 + $0x38] sm:$0xff] %v1568
      %s1577 = scalar_lea.vmem %s2, 40
      %v1578 = vld [vmem:[%s1577] sm:$0xff]
      %v1579 = vld [vmem:[#allocation3] sm:$0xff]
      %v1580 = vld [vmem:[#allocation3 + $0x8] sm:$0xff]
      %v1581 = vld [vmem:[#allocation3 + $0x10] sm:$0xff]
      %v1582 = vld [vmem:[#allocation3 + $0x18] sm:$0xff]
      %v1583 = vld [vmem:[#allocation3 + $0x20] sm:$0xff]
      %v1584 = vld [vmem:[#allocation3 + $0x28] sm:$0xff]
      %v1585 = vld [vmem:[#allocation3 + $0x30] sm:$0xff]
      %v1586 = vld [vmem:[#allocation3 + $0x38] sm:$0xff]
      %1587 = vst [vmem:[#allocation1] ss:$2 sm:$0xff] %v1087
      %v1588 = vld.sshfl [vmem:[#allocation1] sm:$0xff pattern:$0x75316420]
      %v1589 = vld.sshfl [vmem:[#allocation1 + $0x8] sm:$0xff pattern:$0x75316420]
      %1590 = vrot.lane.b32.xlu0 %v1588, 126
      %v1591 = vpop.permute.xlu0 %1590
      %1592 = vrot.lane.b32.xlu0 %v1589, 126
      %v1593 = vpop.permute.xlu0 %1592
      %v1594 = vsel %vm833, %v1591, %v1593
      %v1596 = vsel %vm342, %v1578, 0
      %v1598 = vsel %vm301, %v1594, 0
      %1600 = vmatpush.msra.mxu0 0.0
      %1601 = vmatpush.msra.mxu0 0.0
      %1602 = vmatpush.msra.mxu0 0.0
      %1603 = vmatpush.msra.mxu0 0.0
      %1604 = vmatpush.msra.mxu0 0.0
      %1605 = vmatpush.msra.mxu0 0.0
      %1606 = vmatpush.msra.mxu0 0.0
      %1607 = vmatpush.msra.mxu0 0.0
      %1608 = vmatpush.msra.mxu0 0.0
      %1609 = vmatpush.msra.mxu0 0.0
      %1610 = vmatpush.msra.mxu0 0.0
      %1611 = vmatpush.msra.mxu0 0.0
      %1612 = vmatpush.msra.mxu0 0.0
      %1613 = vmatpush.msra.mxu0 0.0
      %1614 = vmatpush.msra.mxu0 0.0
      %1615 = vmatpush.msra.mxu0 %v1598
      %1616 = vmatmul.f32.gmra.mxu0 %v1596
      %v1617 = vpop.f32.mrf.mxu0
      %v1618 = vadd.f32 0.0, %v1617
      %1619 = vdwg.mxu0
      %1620 = vst [vmem:[#allocation1] ss:$2 sm:$0xff] %v1088
      %v1621 = vld.sshfl [vmem:[#allocation1] sm:$0xff pattern:$0x75316420]
      %v1622 = vld.sshfl [vmem:[#allocation1 + $0x8] sm:$0xff pattern:$0x75316420]
      %1623 = vrot.lane.b32.xlu0 %v1621, 126
      %v1624 = vpop.permute.xlu0 %1623
      %1625 = vrot.lane.b32.xlu0 %v1622, 126
      %v1626 = vpop.permute.xlu0 %1625
      %v1627 = vsel %vm833, %v1624, %v1626
      %v1628 = vsel %vm301, %v1627, 0
      %1630 = vmatpush.msra.mxu0 0.0
      %1631 = vmatpush.msra.mxu0 0.0
      %1632 = vmatpush.msra.mxu0 0.0
      %1633 = vmatpush.msra.mxu0 0.0
      %1634 = vmatpush.msra.mxu0 0.0
      %1635 = vmatpush.msra.mxu0 0.0
      %1636 = vmatpush.msra.mxu0 0.0
      %1637 = vmatpush.msra.mxu0 0.0
      %1638 = vmatpush.msra.mxu0 0.0
      %1639 = vmatpush.msra.mxu0 0.0
      %1640 = vmatpush.msra.mxu0 0.0
      %1641 = vmatpush.msra.mxu0 0.0
      %1642 = vmatpush.msra.mxu0 0.0
      %1643 = vmatpush.msra.mxu0 0.0
      %1644 = vmatpush.msra.mxu0 0.0
      %1645 = vmatpush.msra.mxu0 %v1628
      %1646 = vmatmul.f32.gmra.mxu0 %v1596
      %v1647 = vpop.f32.mrf.mxu0
      %v1648 = vadd.f32 0.0, %v1647
      %1649 = vdwg.mxu0
      %1650 = vst [vmem:[#allocation1] ss:$2 sm:$0xff] %v1089
      %v1651 = vld.sshfl [vmem:[#allocation1] sm:$0xff pattern:$0x75316420]
      %v1652 = vld.sshfl [vmem:[#allocation1 + $0x8] sm:$0xff pattern:$0x75316420]
      %1653 = vrot.lane.b32.xlu0 %v1651, 126
      %v1654 = vpop.permute.xlu0 %1653
      %1655 = vrot.lane.b32.xlu0 %v1652, 126
      %v1656 = vpop.permute.xlu0 %1655
      %v1657 = vsel %vm833, %v1654, %v1656
      %v1658 = vsel %vm301, %v1657, 0
      %1660 = vmatpush.msra.mxu0 0.0
      %1661 = vmatpush.msra.mxu0 0.0
      %1662 = vmatpush.msra.mxu0 0.0
      %1663 = vmatpush.msra.mxu0 0.0
      %1664 = vmatpush.msra.mxu0 0.0
      %1665 = vmatpush.msra.mxu0 0.0
      %1666 = vmatpush.msra.mxu0 0.0
      %1667 = vmatpush.msra.mxu0 0.0
      %1668 = vmatpush.msra.mxu0 0.0
      %1669 = vmatpush.msra.mxu0 0.0
      %1670 = vmatpush.msra.mxu0 0.0
      %1671 = vmatpush.msra.mxu0 0.0
      %1672 = vmatpush.msra.mxu0 0.0
      %1673 = vmatpush.msra.mxu0 0.0
      %1674 = vmatpush.msra.mxu0 0.0
      %1675 = vmatpush.msra.mxu0 %v1658
      %1676 = vmatmul.f32.gmra.mxu0 %v1596
      %v1677 = vpop.f32.mrf.mxu0
      %v1678 = vadd.f32 0.0, %v1677
      %1679 = vdwg.mxu0
      %1680 = vst [vmem:[#allocation1] ss:$2 sm:$0xff] %v1090
      %v1681 = vld.sshfl [vmem:[#allocation1] sm:$0xff pattern:$0x75316420]
      %v1682 = vld.sshfl [vmem:[#allocation1 + $0x8] sm:$0xff pattern:$0x75316420]
      %1683 = vrot.lane.b32.xlu0 %v1681, 126
      %v1684 = vpop.permute.xlu0 %1683
      %1685 = vrot.lane.b32.xlu0 %v1682, 126
      %v1686 = vpop.permute.xlu0 %1685
      %v1687 = vsel %vm833, %v1684, %v1686
      %v1688 = vsel %vm301, %v1687, 0
      %1690 = vmatpush.msra.mxu0 0.0
      %1691 = vmatpush.msra.mxu0 0.0
      %1692 = vmatpush.msra.mxu0 0.0
      %1693 = vmatpush.msra.mxu0 0.0
      %1694 = vmatpush.msra.mxu0 0.0
      %1695 = vmatpush.msra.mxu0 0.0
      %1696 = vmatpush.msra.mxu0 0.0
      %1697 = vmatpush.msra.mxu0 0.0
      %1698 = vmatpush.msra.mxu0 0.0
      %1699 = vmatpush.msra.mxu0 0.0
      %1700 = vmatpush.msra.mxu0 0.0
      %1701 = vmatpush.msra.mxu0 0.0
      %1702 = vmatpush.msra.mxu0 0.0
      %1703 = vmatpush.msra.mxu0 0.0
      %1704 = vmatpush.msra.mxu0 0.0
      %1705 = vmatpush.msra.mxu0 %v1688
      %1706 = vmatmul.f32.gmra.mxu0 %v1596
      %v1707 = vpop.f32.mrf.mxu0
      %v1708 = vadd.f32 0.0, %v1707
      %1709 = vdwg.mxu0
      %1710 = vst [vmem:[#allocation1] ss:$2 sm:$0xff] %v1091
      %v1711 = vld.sshfl [vmem:[#allocation1] sm:$0xff pattern:$0x75316420]
      %v1712 = vld.sshfl [vmem:[#allocation1 + $0x8] sm:$0xff pattern:$0x75316420]
      %1713 = vrot.lane.b32.xlu0 %v1711, 126
      %v1714 = vpop.permute.xlu0 %1713
      %1715 = vrot.lane.b32.xlu0 %v1712, 126
      %v1716 = vpop.permute.xlu0 %1715
      %v1717 = vsel %vm833, %v1714, %v1716
      %v1718 = vsel %vm301, %v1717, 0
      %1720 = vmatpush.msra.mxu0 0.0
      %1721 = vmatpush.msra.mxu0 0.0
      %1722 = vmatpush.msra.mxu0 0.0
      %1723 = vmatpush.msra.mxu0 0.0
      %1724 = vmatpush.msra.mxu0 0.0
      %1725 = vmatpush.msra.mxu0 0.0
      %1726 = vmatpush.msra.mxu0 0.0
      %1727 = vmatpush.msra.mxu0 0.0
      %1728 = vmatpush.msra.mxu0 0.0
      %1729 = vmatpush.msra.mxu0 0.0
      %1730 = vmatpush.msra.mxu0 0.0
      %1731 = vmatpush.msra.mxu0 0.0
      %1732 = vmatpush.msra.mxu0 0.0
      %1733 = vmatpush.msra.mxu0 0.0
      %1734 = vmatpush.msra.mxu0 0.0
      %1735 = vmatpush.msra.mxu0 %v1718
      %1736 = vmatmul.f32.gmra.mxu0 %v1596
      %v1737 = vpop.f32.mrf.mxu0
      %v1738 = vadd.f32 0.0, %v1737
      %1739 = vdwg.mxu0
      %1740 = vst [vmem:[#allocation1] ss:$2 sm:$0xff] %v1092
      %v1741 = vld.sshfl [vmem:[#allocation1] sm:$0xff pattern:$0x75316420]
      %v1742 = vld.sshfl [vmem:[#allocation1 + $0x8] sm:$0xff pattern:$0x75316420]
      %1743 = vrot.lane.b32.xlu0 %v1741, 126
      %v1744 = vpop.permute.xlu0 %1743
      %1745 = vrot.lane.b32.xlu0 %v1742, 126
      %v1746 = vpop.permute.xlu0 %1745
      %v1747 = vsel %vm833, %v1744, %v1746
      %v1748 = vsel %vm301, %v1747, 0
      %1750 = vmatpush.msra.mxu0 0.0
      %1751 = vmatpush.msra.mxu0 0.0
      %1752 = vmatpush.msra.mxu0 0.0
      %1753 = vmatpush.msra.mxu0 0.0
      %1754 = vmatpush.msra.mxu0 0.0
      %1755 = vmatpush.msra.mxu0 0.0
      %1756 = vmatpush.msra.mxu0 0.0
      %1757 = vmatpush.msra.mxu0 0.0
      %1758 = vmatpush.msra.mxu0 0.0
      %1759 = vmatpush.msra.mxu0 0.0
      %1760 = vmatpush.msra.mxu0 0.0
      %1761 = vmatpush.msra.mxu0 0.0
      %1762 = vmatpush.msra.mxu0 0.0
      %1763 = vmatpush.msra.mxu0 0.0
      %1764 = vmatpush.msra.mxu0 0.0
      %1765 = vmatpush.msra.mxu0 %v1748
      %1766 = vmatmul.f32.gmra.mxu0 %v1596
      %v1767 = vpop.f32.mrf.mxu0
      %v1768 = vadd.f32 0.0, %v1767
      %1769 = vdwg.mxu0
      %1770 = vst [vmem:[#allocation1] ss:$2 sm:$0xff] %v1093
      %v1771 = vld.sshfl [vmem:[#allocation1] sm:$0xff pattern:$0x75316420]
      %v1772 = vld.sshfl [vmem:[#allocation1 + $0x8] sm:$0xff pattern:$0x75316420]
      %1773 = vrot.lane.b32.xlu0 %v1771, 126
      %v1774 = vpop.permute.xlu0 %1773
      %1775 = vrot.lane.b32.xlu0 %v1772, 126
      %v1776 = vpop.permute.xlu0 %1775
      %v1777 = vsel %vm833, %v1774, %v1776
      %v1778 = vsel %vm301, %v1777, 0
      %1780 = vmatpush.msra.mxu0 0.0
      %1781 = vmatpush.msra.mxu0 0.0
      %1782 = vmatpush.msra.mxu0 0.0
      %1783 = vmatpush.msra.mxu0 0.0
      %1784 = vmatpush.msra.mxu0 0.0
      %1785 = vmatpush.msra.mxu0 0.0
      %1786 = vmatpush.msra.mxu0 0.0
      %1787 = vmatpush.msra.mxu0 0.0
      %1788 = vmatpush.msra.mxu0 0.0
      %1789 = vmatpush.msra.mxu0 0.0
      %1790 = vmatpush.msra.mxu0 0.0
      %1791 = vmatpush.msra.mxu0 0.0
      %1792 = vmatpush.msra.mxu0 0.0
      %1793 = vmatpush.msra.mxu0 0.0
      %1794 = vmatpush.msra.mxu0 0.0
      %1795 = vmatpush.msra.mxu0 %v1778
      %1796 = vmatmul.f32.gmra.mxu0 %v1596
      %v1797 = vpop.f32.mrf.mxu0
      %v1798 = vadd.f32 0.0, %v1797
      %1799 = vdwg.mxu0
      %1800 = vst [vmem:[#allocation1] ss:$2 sm:$0xff] %v1094
      %v1801 = vld.sshfl [vmem:[#allocation1] sm:$0xff pattern:$0x75316420]
      %v1802 = vld.sshfl [vmem:[#allocation1 + $0x8] sm:$0xff pattern:$0x75316420]
      %1803 = vrot.lane.b32.xlu0 %v1801, 126
      %v1804 = vpop.permute.xlu0 %1803
      %1805 = vrot.lane.b32.xlu0 %v1802, 126
      %v1806 = vpop.permute.xlu0 %1805
      %v1807 = vsel %vm833, %v1804, %v1806
      %v1808 = vsel %vm301, %v1807, 0
      %1810 = vmatpush.msra.mxu0 0.0
      %1811 = vmatpush.msra.mxu0 0.0
      %1812 = vmatpush.msra.mxu0 0.0
      %1813 = vmatpush.msra.mxu0 0.0
      %1814 = vmatpush.msra.mxu0 0.0
      %1815 = vmatpush.msra.mxu0 0.0
      %1816 = vmatpush.msra.mxu0 0.0
      %1817 = vmatpush.msra.mxu0 0.0
      %1818 = vmatpush.msra.mxu0 0.0
      %1819 = vmatpush.msra.mxu0 0.0
      %1820 = vmatpush.msra.mxu0 0.0
      %1821 = vmatpush.msra.mxu0 0.0
      %1822 = vmatpush.msra.mxu0 0.0
      %1823 = vmatpush.msra.mxu0 0.0
      %1824 = vmatpush.msra.mxu0 0.0
      %1825 = vmatpush.msra.mxu0 %v1808
      %1826 = vmatmul.f32.gmra.mxu0 %v1596
      %v1827 = vpop.f32.mrf.mxu0
      %v1828 = vadd.f32 0.0, %v1827
      %1829 = vdwg.mxu0
      %v1830 = vadd.f32 %v1579, %v1618
      %v1831 = vadd.f32 %v1580, %v1648
      %v1832 = vadd.f32 %v1581, %v1678
      %v1833 = vadd.f32 %v1582, %v1708
      %v1834 = vadd.f32 %v1583, %v1738
      %v1835 = vadd.f32 %v1584, %v1768
      %v1836 = vadd.f32 %v1585, %v1798
      %v1837 = vadd.f32 %v1586, %v1828
      %1838 = vst [vmem:[#allocation3] sm:$0xff] %v1830
      %1839 = vst [vmem:[#allocation3 + $0x8] sm:$0xff] %v1831
      %1840 = vst [vmem:[#allocation3 + $0x10] sm:$0xff] %v1832
      %1841 = vst [vmem:[#allocation3 + $0x18] sm:$0xff] %v1833
      %1842 = vst [vmem:[#allocation3 + $0x20] sm:$0xff] %v1834
      %1843 = vst [vmem:[#allocation3 + $0x28] sm:$0xff] %v1835
      %1844 = vst [vmem:[#allocation3 + $0x30] sm:$0xff] %v1836
      %1845 = vst [vmem:[#allocation3 + $0x38] sm:$0xff] %v1837
      %s1846 = scalar_lea.vmem [#allocation2], 16
      %v1847 = vld [vmem:[%s1846] sm:$0xff]
      %v1848 = vld [vmem:[%s1846 + $0x8] sm:$0xff]
      %v1849 = vld [vmem:[%s1846 + $0x10] sm:$0xff]
      %v1850 = vld [vmem:[%s1846 + $0x18] sm:$0xff]
      %v1851 = vld [vmem:[%s1846 + $0x20] sm:$0xff]
      %v1852 = vld [vmem:[%s1846 + $0x28] sm:$0xff]
      %v1853 = vld [vmem:[%s1846 + $0x30] sm:$0xff]
      %v1854 = vld [vmem:[%s1846 + $0x38] sm:$0xff]
      %s1855 = scalar_lea.vmem %s2, 48
      %v1856 = vld [vmem:[%s1855] sm:$0xff]
      %v1857 = vld [vmem:[#allocation3] sm:$0xff]
      %v1858 = vld [vmem:[#allocation3 + $0x8] sm:$0xff]
      %v1859 = vld [vmem:[#allocation3 + $0x10] sm:$0xff]
      %v1860 = vld [vmem:[#allocation3 + $0x18] sm:$0xff]
      %v1861 = vld [vmem:[#allocation3 + $0x20] sm:$0xff]
      %v1862 = vld [vmem:[#allocation3 + $0x28] sm:$0xff]
      %v1863 = vld [vmem:[#allocation3 + $0x30] sm:$0xff]
      %v1864 = vld [vmem:[#allocation3 + $0x38] sm:$0xff]
      %v1866 = vsel %vm342, %v1856, 0
      %v1869 = vsel %vm301, %v1847, 0
      %1871 = vmatpush.msra.mxu0 0.0
      %1872 = vmatpush.msra.mxu0 0.0
      %1873 = vmatpush.msra.mxu0 0.0
      %1874 = vmatpush.msra.mxu0 0.0
      %1875 = vmatpush.msra.mxu0 0.0
      %1876 = vmatpush.msra.mxu0 0.0
      %1877 = vmatpush.msra.mxu0 0.0
      %1878 = vmatpush.msra.mxu0 0.0
      %1879 = vmatpush.msra.mxu0 0.0
      %1880 = vmatpush.msra.mxu0 0.0
      %1881 = vmatpush.msra.mxu0 0.0
      %1882 = vmatpush.msra.mxu0 0.0
      %1883 = vmatpush.msra.mxu0 0.0
      %1884 = vmatpush.msra.mxu0 0.0
      %1885 = vmatpush.msra.mxu0 0.0
      %1886 = vmatpush.msra.mxu0 %v1869
      %1887 = vmatmul.f32.gmra.mxu0 %v1866
      %v1888 = vpop.f32.mrf.mxu0
      %v1889 = vadd.f32 0.0, %v1888
      %1890 = vdwg.mxu0
      %v1892 = vsel %vm301, %v1848, 0
      %1894 = vmatpush.msra.mxu0 0.0
      %1895 = vmatpush.msra.mxu0 0.0
      %1896 = vmatpush.msra.mxu0 0.0
      %1897 = vmatpush.msra.mxu0 0.0
      %1898 = vmatpush.msra.mxu0 0.0
      %1899 = vmatpush.msra.mxu0 0.0
      %1900 = vmatpush.msra.mxu0 0.0
      %1901 = vmatpush.msra.mxu0 0.0
      %1902 = vmatpush.msra.mxu0 0.0
      %1903 = vmatpush.msra.mxu0 0.0
      %1904 = vmatpush.msra.mxu0 0.0
      %1905 = vmatpush.msra.mxu0 0.0
      %1906 = vmatpush.msra.mxu0 0.0
      %1907 = vmatpush.msra.mxu0 0.0
      %1908 = vmatpush.msra.mxu0 0.0
      %1909 = vmatpush.msra.mxu0 %v1892
      %1910 = vmatmul.f32.gmra.mxu0 %v1866
      %v1911 = vpop.f32.mrf.mxu0
      %v1912 = vadd.f32 0.0, %v1911
      %1913 = vdwg.mxu0
      %v1915 = vsel %vm301, %v1849, 0
      %1917 = vmatpush.msra.mxu0 0.0
      %1918 = vmatpush.msra.mxu0 0.0
      %1919 = vmatpush.msra.mxu0 0.0
      %1920 = vmatpush.msra.mxu0 0.0
      %1921 = vmatpush.msra.mxu0 0.0
      %1922 = vmatpush.msra.mxu0 0.0
      %1923 = vmatpush.msra.mxu0 0.0
      %1924 = vmatpush.msra.mxu0 0.0
      %1925 = vmatpush.msra.mxu0 0.0
      %1926 = vmatpush.msra.mxu0 0.0
      %1927 = vmatpush.msra.mxu0 0.0
      %1928 = vmatpush.msra.mxu0 0.0
      %1929 = vmatpush.msra.mxu0 0.0
      %1930 = vmatpush.msra.mxu0 0.0
      %1931 = vmatpush.msra.mxu0 0.0
      %1932 = vmatpush.msra.mxu0 %v1915
      %1933 = vmatmul.f32.gmra.mxu0 %v1866
      %v1934 = vpop.f32.mrf.mxu0
      %v1935 = vadd.f32 0.0, %v1934
      %1936 = vdwg.mxu0
      %v1938 = vsel %vm301, %v1850, 0
      %1940 = vmatpush.msra.mxu0 0.0
      %1941 = vmatpush.msra.mxu0 0.0
      %1942 = vmatpush.msra.mxu0 0.0
      %1943 = vmatpush.msra.mxu0 0.0
      %1944 = vmatpush.msra.mxu0 0.0
      %1945 = vmatpush.msra.mxu0 0.0
      %1946 = vmatpush.msra.mxu0 0.0
      %1947 = vmatpush.msra.mxu0 0.0
      %1948 = vmatpush.msra.mxu0 0.0
      %1949 = vmatpush.msra.mxu0 0.0
      %1950 = vmatpush.msra.mxu0 0.0
      %1951 = vmatpush.msra.mxu0 0.0
      %1952 = vmatpush.msra.mxu0 0.0
      %1953 = vmatpush.msra.mxu0 0.0
      %1954 = vmatpush.msra.mxu0 0.0
      %1955 = vmatpush.msra.mxu0 %v1938
      %1956 = vmatmul.f32.gmra.mxu0 %v1866
      %v1957 = vpop.f32.mrf.mxu0
      %v1958 = vadd.f32 0.0, %v1957
      %1959 = vdwg.mxu0
      %v1961 = vsel %vm301, %v1851, 0
      %1963 = vmatpush.msra.mxu0 0.0
      %1964 = vmatpush.msra.mxu0 0.0
      %1965 = vmatpush.msra.mxu0 0.0
      %1966 = vmatpush.msra.mxu0 0.0
      %1967 = vmatpush.msra.mxu0 0.0
      %1968 = vmatpush.msra.mxu0 0.0
      %1969 = vmatpush.msra.mxu0 0.0
      %1970 = vmatpush.msra.mxu0 0.0
      %1971 = vmatpush.msra.mxu0 0.0
      %1972 = vmatpush.msra.mxu0 0.0
      %1973 = vmatpush.msra.mxu0 0.0
      %1974 = vmatpush.msra.mxu0 0.0
      %1975 = vmatpush.msra.mxu0 0.0
      %1976 = vmatpush.msra.mxu0 0.0
      %1977 = vmatpush.msra.mxu0 0.0
      %1978 = vmatpush.msra.mxu0 %v1961
      %1979 = vmatmul.f32.gmra.mxu0 %v1866
      %v1980 = vpop.f32.mrf.mxu0
      %v1981 = vadd.f32 0.0, %v1980
      %1982 = vdwg.mxu0
      %v1984 = vsel %vm301, %v1852, 0
      %1986 = vmatpush.msra.mxu0 0.0
      %1987 = vmatpush.msra.mxu0 0.0
      %1988 = vmatpush.msra.mxu0 0.0
      %1989 = vmatpush.msra.mxu0 0.0
      %1990 = vmatpush.msra.mxu0 0.0
      %1991 = vmatpush.msra.mxu0 0.0
      %1992 = vmatpush.msra.mxu0 0.0
      %1993 = vmatpush.msra.mxu0 0.0
      %1994 = vmatpush.msra.mxu0 0.0
      %1995 = vmatpush.msra.mxu0 0.0
      %1996 = vmatpush.msra.mxu0 0.0
      %1997 = vmatpush.msra.mxu0 0.0
      %1998 = vmatpush.msra.mxu0 0.0
      %1999 = vmatpush.msra.mxu0 0.0
      %2000 = vmatpush.msra.mxu0 0.0
      %2001 = vmatpush.msra.mxu0 %v1984
      %2002 = vmatmul.f32.gmra.mxu0 %v1866
      %v2003 = vpop.f32.mrf.mxu0
      %v2004 = vadd.f32 0.0, %v2003
      %2005 = vdwg.mxu0
      %v2007 = vsel %vm301, %v1853, 0
      %2009 = vmatpush.msra.mxu0 0.0
      %2010 = vmatpush.msra.mxu0 0.0
      %2011 = vmatpush.msra.mxu0 0.0
      %2012 = vmatpush.msra.mxu0 0.0
      %2013 = vmatpush.msra.mxu0 0.0
      %2014 = vmatpush.msra.mxu0 0.0
      %2015 = vmatpush.msra.mxu0 0.0
      %2016 = vmatpush.msra.mxu0 0.0
      %2017 = vmatpush.msra.mxu0 0.0
      %2018 = vmatpush.msra.mxu0 0.0
      %2019 = vmatpush.msra.mxu0 0.0
      %2020 = vmatpush.msra.mxu0 0.0
      %2021 = vmatpush.msra.mxu0 0.0
      %2022 = vmatpush.msra.mxu0 0.0
      %2023 = vmatpush.msra.mxu0 0.0
      %2024 = vmatpush.msra.mxu0 %v2007
      %2025 = vmatmul.f32.gmra.mxu0 %v1866
      %v2026 = vpop.f32.mrf.mxu0
      %v2027 = vadd.f32 0.0, %v2026
      %2028 = vdwg.mxu0
      %v2030 = vsel %vm301, %v1854, 0
      %2032 = vmatpush.msra.mxu0 0.0
      %2033 = vmatpush.msra.mxu0 0.0
      %2034 = vmatpush.msra.mxu0 0.0
      %2035 = vmatpush.msra.mxu0 0.0
      %2036 = vmatpush.msra.mxu0 0.0
      %2037 = vmatpush.msra.mxu0 0.0
      %2038 = vmatpush.msra.mxu0 0.0
      %2039 = vmatpush.msra.mxu0 0.0
      %2040 = vmatpush.msra.mxu0 0.0
      %2041 = vmatpush.msra.mxu0 0.0
      %2042 = vmatpush.msra.mxu0 0.0
      %2043 = vmatpush.msra.mxu0 0.0
      %2044 = vmatpush.msra.mxu0 0.0
      %2045 = vmatpush.msra.mxu0 0.0
      %2046 = vmatpush.msra.mxu0 0.0
      %2047 = vmatpush.msra.mxu0 %v2030
      %2048 = vmatmul.f32.gmra.mxu0 %v1866
      %v2049 = vpop.f32.mrf.mxu0
      %v2050 = vadd.f32 0.0, %v2049
      %2051 = vdwg.mxu0
      %v2052 = vadd.f32 %v1857, %v1889
      %v2053 = vadd.f32 %v1858, %v1912
      %v2054 = vadd.f32 %v1859, %v1935
      %v2055 = vadd.f32 %v1860, %v1958
      %v2056 = vadd.f32 %v1861, %v1981
      %v2057 = vadd.f32 %v1862, %v2004
      %v2058 = vadd.f32 %v1863, %v2027
      %v2059 = vadd.f32 %v1864, %v2050
      %2060 = vst [vmem:[#allocation3] sm:$0xff] %v2052
      %2061 = vst [vmem:[#allocation3 + $0x8] sm:$0xff] %v2053
      %2062 = vst [vmem:[#allocation3 + $0x10] sm:$0xff] %v2054
      %2063 = vst [vmem:[#allocation3 + $0x18] sm:$0xff] %v2055
      %2064 = vst [vmem:[#allocation3 + $0x20] sm:$0xff] %v2056
      %2065 = vst [vmem:[#allocation3 + $0x28] sm:$0xff] %v2057
      %2066 = vst [vmem:[#allocation3 + $0x30] sm:$0xff] %v2058
      %2067 = vst [vmem:[#allocation3 + $0x38] sm:$0xff] %v2059
      %s2068 = scalar_lea.vmem %s2, 56
      %v2069 = vld [vmem:[%s2068] sm:$0xff]
      %v2070 = vld [vmem:[#allocation3] sm:$0xff]
      %v2071 = vld [vmem:[#allocation3 + $0x8] sm:$0xff]
      %v2072 = vld [vmem:[#allocation3 + $0x10] sm:$0xff]
      %v2073 = vld [vmem:[#allocation3 + $0x18] sm:$0xff]
      %v2074 = vld [vmem:[#allocation3 + $0x20] sm:$0xff]
      %v2075 = vld [vmem:[#allocation3 + $0x28] sm:$0xff]
      %v2076 = vld [vmem:[#allocation3 + $0x30] sm:$0xff]
      %v2077 = vld [vmem:[#allocation3 + $0x38] sm:$0xff]
      %2078 = vst [vmem:[#allocation1] ss:$2 sm:$0xff] %v1847
      %v2079 = vld.sshfl [vmem:[#allocation1] sm:$0xff pattern:$0x75316420]
      %v2080 = vld.sshfl [vmem:[#allocation1 + $0x8] sm:$0xff pattern:$0x75316420]
      %2081 = vrot.lane.b32.xlu0 %v2079, 127
      %v2082 = vpop.permute.xlu0 %2081
      %2083 = vrot.lane.b32.xlu0 %v2080, 127
      %v2084 = vpop.permute.xlu0 %2083
      %v2085 = vsel %vm563, %v2082, %v2084
      %v2087 = vsel %vm342, %v2069, 0
      %v2089 = vsel %vm301, %v2085, 0
      %2091 = vmatpush.msra.mxu0 0.0
      %2092 = vmatpush.msra.mxu0 0.0
      %2093 = vmatpush.msra.mxu0 0.0
      %2094 = vmatpush.msra.mxu0 0.0
      %2095 = vmatpush.msra.mxu0 0.0
      %2096 = vmatpush.msra.mxu0 0.0
      %2097 = vmatpush.msra.mxu0 0.0
      %2098 = vmatpush.msra.mxu0 0.0
      %2099 = vmatpush.msra.mxu0 0.0
      %2100 = vmatpush.msra.mxu0 0.0
      %2101 = vmatpush.msra.mxu0 0.0
      %2102 = vmatpush.msra.mxu0 0.0
      %2103 = vmatpush.msra.mxu0 0.0
      %2104 = vmatpush.msra.mxu0 0.0
      %2105 = vmatpush.msra.mxu0 0.0
      %2106 = vmatpush.msra.mxu0 %v2089
      %2107 = vmatmul.f32.gmra.mxu0 %v2087
      %v2108 = vpop.f32.mrf.mxu0
      %v2109 = vadd.f32 0.0, %v2108
      %2110 = vdwg.mxu0
      %2111 = vst [vmem:[#allocation1] ss:$2 sm:$0xff] %v1848
      %v2112 = vld.sshfl [vmem:[#allocation1] sm:$0xff pattern:$0x75316420]
      %v2113 = vld.sshfl [vmem:[#allocation1 + $0x8] sm:$0xff pattern:$0x75316420]
      %2114 = vrot.lane.b32.xlu0 %v2112, 127
      %v2115 = vpop.permute.xlu0 %2114
      %2116 = vrot.lane.b32.xlu0 %v2113, 127
      %v2117 = vpop.permute.xlu0 %2116
      %v2118 = vsel %vm563, %v2115, %v2117
      %v2119 = vsel %vm301, %v2118, 0
      %2121 = vmatpush.msra.mxu0 0.0
      %2122 = vmatpush.msra.mxu0 0.0
      %2123 = vmatpush.msra.mxu0 0.0
      %2124 = vmatpush.msra.mxu0 0.0
      %2125 = vmatpush.msra.mxu0 0.0
      %2126 = vmatpush.msra.mxu0 0.0
      %2127 = vmatpush.msra.mxu0 0.0
      %2128 = vmatpush.msra.mxu0 0.0
      %2129 = vmatpush.msra.mxu0 0.0
      %2130 = vmatpush.msra.mxu0 0.0
      %2131 = vmatpush.msra.mxu0 0.0
      %2132 = vmatpush.msra.mxu0 0.0
      %2133 = vmatpush.msra.mxu0 0.0
      %2134 = vmatpush.msra.mxu0 0.0
      %2135 = vmatpush.msra.mxu0 0.0
      %2136 = vmatpush.msra.mxu0 %v2119
      %2137 = vmatmul.f32.gmra.mxu0 %v2087
      %v2138 = vpop.f32.mrf.mxu0
      %v2139 = vadd.f32 0.0, %v2138
      %2140 = vdwg.mxu0
      %2141 = vst [vmem:[#allocation1] ss:$2 sm:$0xff] %v1849
      %v2142 = vld.sshfl [vmem:[#allocation1] sm:$0xff pattern:$0x75316420]
      %v2143 = vld.sshfl [vmem:[#allocation1 + $0x8] sm:$0xff pattern:$0x75316420]
      %2144 = vrot.lane.b32.xlu0 %v2142, 127
      %v2145 = vpop.permute.xlu0 %2144
      %2146 = vrot.lane.b32.xlu0 %v2143, 127
      %v2147 = vpop.permute.xlu0 %2146
      %v2148 = vsel %vm563, %v2145, %v2147
      %v2149 = vsel %vm301, %v2148, 0
      %2151 = vmatpush.msra.mxu0 0.0
      %2152 = vmatpush.msra.mxu0 0.0
      %2153 = vmatpush.msra.mxu0 0.0
      %2154 = vmatpush.msra.mxu0 0.0
      %2155 = vmatpush.msra.mxu0 0.0
      %2156 = vmatpush.msra.mxu0 0.0
      %2157 = vmatpush.msra.mxu0 0.0
      %2158 = vmatpush.msra.mxu0 0.0
      %2159 = vmatpush.msra.mxu0 0.0
      %2160 = vmatpush.msra.mxu0 0.0
      %2161 = vmatpush.msra.mxu0 0.0
      %2162 = vmatpush.msra.mxu0 0.0
      %2163 = vmatpush.msra.mxu0 0.0
      %2164 = vmatpush.msra.mxu0 0.0
      %2165 = vmatpush.msra.mxu0 0.0
      %2166 = vmatpush.msra.mxu0 %v2149
      %2167 = vmatmul.f32.gmra.mxu0 %v2087
      %v2168 = vpop.f32.mrf.mxu0
      %v2169 = vadd.f32 0.0, %v2168
      %2170 = vdwg.mxu0
      %2171 = vst [vmem:[#allocation1] ss:$2 sm:$0xff] %v1850
      %v2172 = vld.sshfl [vmem:[#allocation1] sm:$0xff pattern:$0x75316420]
      %v2173 = vld.sshfl [vmem:[#allocation1 + $0x8] sm:$0xff pattern:$0x75316420]
      %2174 = vrot.lane.b32.xlu0 %v2172, 127
      %v2175 = vpop.permute.xlu0 %2174
      %2176 = vrot.lane.b32.xlu0 %v2173, 127
      %v2177 = vpop.permute.xlu0 %2176
      %v2178 = vsel %vm563, %v2175, %v2177
      %v2179 = vsel %vm301, %v2178, 0
      %2181 = vmatpush.msra.mxu0 0.0
      %2182 = vmatpush.msra.mxu0 0.0
      %2183 = vmatpush.msra.mxu0 0.0
      %2184 = vmatpush.msra.mxu0 0.0
      %2185 = vmatpush.msra.mxu0 0.0
      %2186 = vmatpush.msra.mxu0 0.0
      %2187 = vmatpush.msra.mxu0 0.0
      %2188 = vmatpush.msra.mxu0 0.0
      %2189 = vmatpush.msra.mxu0 0.0
      %2190 = vmatpush.msra.mxu0 0.0
      %2191 = vmatpush.msra.mxu0 0.0
      %2192 = vmatpush.msra.mxu0 0.0
      %2193 = vmatpush.msra.mxu0 0.0
      %2194 = vmatpush.msra.mxu0 0.0
      %2195 = vmatpush.msra.mxu0 0.0
      %2196 = vmatpush.msra.mxu0 %v2179
      %2197 = vmatmul.f32.gmra.mxu0 %v2087
      %v2198 = vpop.f32.mrf.mxu0
      %v2199 = vadd.f32 0.0, %v2198
      %2200 = vdwg.mxu0
      %2201 = vst [vmem:[#allocation1] ss:$2 sm:$0xff] %v1851
      %v2202 = vld.sshfl [vmem:[#allocation1] sm:$0xff pattern:$0x75316420]
      %v2203 = vld.sshfl [vmem:[#allocation1 + $0x8] sm:$0xff pattern:$0x75316420]
      %2204 = vrot.lane.b32.xlu0 %v2202, 127
      %v2205 = vpop.permute.xlu0 %2204
      %2206 = vrot.lane.b32.xlu0 %v2203, 127
      %v2207 = vpop.permute.xlu0 %2206
      %v2208 = vsel %vm563, %v2205, %v2207
      %v2209 = vsel %vm301, %v2208, 0
      %2211 = vmatpush.msra.mxu0 0.0
      %2212 = vmatpush.msra.mxu0 0.0
      %2213 = vmatpush.msra.mxu0 0.0
      %2214 = vmatpush.msra.mxu0 0.0
      %2215 = vmatpush.msra.mxu0 0.0
      %2216 = vmatpush.msra.mxu0 0.0
      %2217 = vmatpush.msra.mxu0 0.0
      %2218 = vmatpush.msra.mxu0 0.0
      %2219 = vmatpush.msra.mxu0 0.0
      %2220 = vmatpush.msra.mxu0 0.0
      %2221 = vmatpush.msra.mxu0 0.0
      %2222 = vmatpush.msra.mxu0 0.0
      %2223 = vmatpush.msra.mxu0 0.0
      %2224 = vmatpush.msra.mxu0 0.0
      %2225 = vmatpush.msra.mxu0 0.0
      %2226 = vmatpush.msra.mxu0 %v2209
      %2227 = vmatmul.f32.gmra.mxu0 %v2087
      %v2228 = vpop.f32.mrf.mxu0
      %v2229 = vadd.f32 0.0, %v2228
      %2230 = vdwg.mxu0
      %2231 = vst [vmem:[#allocation1] ss:$2 sm:$0xff] %v1852
      %v2232 = vld.sshfl [vmem:[#allocation1] sm:$0xff pattern:$0x75316420]
      %v2233 = vld.sshfl [vmem:[#allocation1 + $0x8] sm:$0xff pattern:$0x75316420]
      %2234 = vrot.lane.b32.xlu0 %v2232, 127
      %v2235 = vpop.permute.xlu0 %2234
      %2236 = vrot.lane.b32.xlu0 %v2233, 127
      %v2237 = vpop.permute.xlu0 %2236
      %v2238 = vsel %vm563, %v2235, %v2237
      %v2239 = vsel %vm301, %v2238, 0
      %2241 = vmatpush.msra.mxu0 0.0
      %2242 = vmatpush.msra.mxu0 0.0
      %2243 = vmatpush.msra.mxu0 0.0
      %2244 = vmatpush.msra.mxu0 0.0
      %2245 = vmatpush.msra.mxu0 0.0
      %2246 = vmatpush.msra.mxu0 0.0
      %2247 = vmatpush.msra.mxu0 0.0
      %2248 = vmatpush.msra.mxu0 0.0
      %2249 = vmatpush.msra.mxu0 0.0
      %2250 = vmatpush.msra.mxu0 0.0
      %2251 = vmatpush.msra.mxu0 0.0
      %2252 = vmatpush.msra.mxu0 0.0
      %2253 = vmatpush.msra.mxu0 0.0
      %2254 = vmatpush.msra.mxu0 0.0
      %2255 = vmatpush.msra.mxu0 0.0
      %2256 = vmatpush.msra.mxu0 %v2239
      %2257 = vmatmul.f32.gmra.mxu0 %v2087
      %v2258 = vpop.f32.mrf.mxu0
      %v2259 = vadd.f32 0.0, %v2258
      %2260 = vdwg.mxu0
      %2261 = vst [vmem:[#allocation1] ss:$2 sm:$0xff] %v1853
      %v2262 = vld.sshfl [vmem:[#allocation1] sm:$0xff pattern:$0x75316420]
      %v2263 = vld.sshfl [vmem:[#allocation1 + $0x8] sm:$0xff pattern:$0x75316420]
      %2264 = vrot.lane.b32.xlu0 %v2262, 127
      %v2265 = vpop.permute.xlu0 %2264
      %2266 = vrot.lane.b32.xlu0 %v2263, 127
      %v2267 = vpop.permute.xlu0 %2266
      %v2268 = vsel %vm563, %v2265, %v2267
      %v2269 = vsel %vm301, %v2268, 0
      %2271 = vmatpush.msra.mxu0 0.0
      %2272 = vmatpush.msra.mxu0 0.0
      %2273 = vmatpush.msra.mxu0 0.0
      %2274 = vmatpush.msra.mxu0 0.0
      %2275 = vmatpush.msra.mxu0 0.0
      %2276 = vmatpush.msra.mxu0 0.0
      %2277 = vmatpush.msra.mxu0 0.0
      %2278 = vmatpush.msra.mxu0 0.0
      %2279 = vmatpush.msra.mxu0 0.0
      %2280 = vmatpush.msra.mxu0 0.0
      %2281 = vmatpush.msra.mxu0 0.0
      %2282 = vmatpush.msra.mxu0 0.0
      %2283 = vmatpush.msra.mxu0 0.0
      %2284 = vmatpush.msra.mxu0 0.0
      %2285 = vmatpush.msra.mxu0 0.0
      %2286 = vmatpush.msra.mxu0 %v2269
      %2287 = vmatmul.f32.gmra.mxu0 %v2087
      %v2288 = vpop.f32.mrf.mxu0
      %v2289 = vadd.f32 0.0, %v2288
      %2290 = vdwg.mxu0
      %2291 = vst [vmem:[#allocation1] ss:$2 sm:$0xff] %v1854
      %v2292 = vld.sshfl [vmem:[#allocation1] sm:$0xff pattern:$0x75316420]
      %v2293 = vld.sshfl [vmem:[#allocation1 + $0x8] sm:$0xff pattern:$0x75316420]
      %2294 = vrot.lane.b32.xlu0 %v2292, 127
      %v2295 = vpop.permute.xlu0 %2294
      %2296 = vrot.lane.b32.xlu0 %v2293, 127
      %v2297 = vpop.permute.xlu0 %2296
      %v2298 = vsel %vm563, %v2295, %v2297
      %v2299 = vsel %vm301, %v2298, 0
      %2301 = vmatpush.msra.mxu0 0.0
      %2302 = vmatpush.msra.mxu0 0.0
      %2303 = vmatpush.msra.mxu0 0.0
      %2304 = vmatpush.msra.mxu0 0.0
      %2305 = vmatpush.msra.mxu0 0.0
      %2306 = vmatpush.msra.mxu0 0.0
      %2307 = vmatpush.msra.mxu0 0.0
      %2308 = vmatpush.msra.mxu0 0.0
      %2309 = vmatpush.msra.mxu0 0.0
      %2310 = vmatpush.msra.mxu0 0.0
      %2311 = vmatpush.msra.mxu0 0.0
      %2312 = vmatpush.msra.mxu0 0.0
      %2313 = vmatpush.msra.mxu0 0.0
      %2314 = vmatpush.msra.mxu0 0.0
      %2315 = vmatpush.msra.mxu0 0.0
      %2316 = vmatpush.msra.mxu0 %v2299
      %2317 = vmatmul.f32.gmra.mxu0 %v2087
      %v2318 = vpop.f32.mrf.mxu0
      %v2319 = vadd.f32 0.0, %v2318
      %2320 = vdwg.mxu0
      %v2321 = vadd.f32 %v2070, %v2109
      %v2322 = vadd.f32 %v2071, %v2139
      %v2323 = vadd.f32 %v2072, %v2169
      %v2324 = vadd.f32 %v2073, %v2199
      %v2325 = vadd.f32 %v2074, %v2229
      %v2326 = vadd.f32 %v2075, %v2259
      %v2327 = vadd.f32 %v2076, %v2289
      %v2328 = vadd.f32 %v2077, %v2319
      %2329 = vst [vmem:[#allocation3] sm:$0xff] %v2321
      %2330 = vst [vmem:[#allocation3 + $0x8] sm:$0xff] %v2322
      %2331 = vst [vmem:[#allocation3 + $0x10] sm:$0xff] %v2323
      %2332 = vst [vmem:[#allocation3 + $0x18] sm:$0xff] %v2324
      %2333 = vst [vmem:[#allocation3 + $0x20] sm:$0xff] %v2325
      %2334 = vst [vmem:[#allocation3 + $0x28] sm:$0xff] %v2326
      %2335 = vst [vmem:[#allocation3 + $0x30] sm:$0xff] %v2327
      %2336 = vst [vmem:[#allocation3 + $0x38] sm:$0xff] %v2328
      %s2337 = scalar_lea.vmem %s2, 64
      %v2338 = vld [vmem:[%s2337] sm:$0xff]
      %v2339 = vld [vmem:[#allocation3] sm:$0xff]
      %v2340 = vld [vmem:[#allocation3 + $0x8] sm:$0xff]
      %v2341 = vld [vmem:[#allocation3 + $0x10] sm:$0xff]
      %v2342 = vld [vmem:[#allocation3 + $0x18] sm:$0xff]
      %v2343 = vld [vmem:[#allocation3 + $0x20] sm:$0xff]
      %v2344 = vld [vmem:[#allocation3 + $0x28] sm:$0xff]
      %v2345 = vld [vmem:[#allocation3 + $0x30] sm:$0xff]
      %v2346 = vld [vmem:[#allocation3 + $0x38] sm:$0xff]
      %2347 = vst [vmem:[#allocation1] ss:$2 sm:$0xff] %v1847
      %v2348 = vld.sshfl [vmem:[#allocation1] sm:$0xff pattern:$0x75316420]
      %v2349 = vld.sshfl [vmem:[#allocation1 + $0x8] sm:$0xff pattern:$0x75316420]
      %2350 = vrot.lane.b32.xlu0 %v2348, 126
      %v2351 = vpop.permute.xlu0 %2350
      %2352 = vrot.lane.b32.xlu0 %v2349, 126
      %v2353 = vpop.permute.xlu0 %2352
      %v2354 = vsel %vm833, %v2351, %v2353
      %v2356 = vsel %vm342, %v2338, 0
      %v2358 = vsel %vm301, %v2354, 0
      %2360 = vmatpush.msra.mxu0 0.0
      %2361 = vmatpush.msra.mxu0 0.0
      %2362 = vmatpush.msra.mxu0 0.0
      %2363 = vmatpush.msra.mxu0 0.0
      %2364 = vmatpush.msra.mxu0 0.0
      %2365 = vmatpush.msra.mxu0 0.0
      %2366 = vmatpush.msra.mxu0 0.0
      %2367 = vmatpush.msra.mxu0 0.0
      %2368 = vmatpush.msra.mxu0 0.0
      %2369 = vmatpush.msra.mxu0 0.0
      %2370 = vmatpush.msra.mxu0 0.0
      %2371 = vmatpush.msra.mxu0 0.0
      %2372 = vmatpush.msra.mxu0 0.0
      %2373 = vmatpush.msra.mxu0 0.0
      %2374 = vmatpush.msra.mxu0 0.0
      %2375 = vmatpush.msra.mxu0 %v2358
      %2376 = vmatmul.f32.gmra.mxu0 %v2356
      %v2377 = vpop.f32.mrf.mxu0
      %v2378 = vadd.f32 0.0, %v2377
      %2379 = vdwg.mxu0
      %2380 = vst [vmem:[#allocation1] ss:$2 sm:$0xff] %v1848
      %v2381 = vld.sshfl [vmem:[#allocation1] sm:$0xff pattern:$0x75316420]
      %v2382 = vld.sshfl [vmem:[#allocation1 + $0x8] sm:$0xff pattern:$0x75316420]
      %2383 = vrot.lane.b32.xlu0 %v2381, 126
      %v2384 = vpop.permute.xlu0 %2383
      %2385 = vrot.lane.b32.xlu0 %v2382, 126
      %v2386 = vpop.permute.xlu0 %2385
      %v2387 = vsel %vm833, %v2384, %v2386
      %v2388 = vsel %vm301, %v2387, 0
      %2390 = vmatpush.msra.mxu0 0.0
      %2391 = vmatpush.msra.mxu0 0.0
      %2392 = vmatpush.msra.mxu0 0.0
      %2393 = vmatpush.msra.mxu0 0.0
      %2394 = vmatpush.msra.mxu0 0.0
      %2395 = vmatpush.msra.mxu0 0.0
      %2396 = vmatpush.msra.mxu0 0.0
      %2397 = vmatpush.msra.mxu0 0.0
      %2398 = vmatpush.msra.mxu0 0.0
      %2399 = vmatpush.msra.mxu0 0.0
      %2400 = vmatpush.msra.mxu0 0.0
      %2401 = vmatpush.msra.mxu0 0.0
      %2402 = vmatpush.msra.mxu0 0.0
      %2403 = vmatpush.msra.mxu0 0.0
      %2404 = vmatpush.msra.mxu0 0.0
      %2405 = vmatpush.msra.mxu0 %v2388
      %2406 = vmatmul.f32.gmra.mxu0 %v2356
      %v2407 = vpop.f32.mrf.mxu0
      %v2408 = vadd.f32 0.0, %v2407
      %2409 = vdwg.mxu0
      %2410 = vst [vmem:[#allocation1] ss:$2 sm:$0xff] %v1849
      %v2411 = vld.sshfl [vmem:[#allocation1] sm:$0xff pattern:$0x75316420]
      %v2412 = vld.sshfl [vmem:[#allocation1 + $0x8] sm:$0xff pattern:$0x75316420]
      %2413 = vrot.lane.b32.xlu0 %v2411, 126
      %v2414 = vpop.permute.xlu0 %2413
      %2415 = vrot.lane.b32.xlu0 %v2412, 126
      %v2416 = vpop.permute.xlu0 %2415
      %v2417 = vsel %vm833, %v2414, %v2416
      %v2418 = vsel %vm301, %v2417, 0
      %2420 = vmatpush.msra.mxu0 0.0
      %2421 = vmatpush.msra.mxu0 0.0
      %2422 = vmatpush.msra.mxu0 0.0
      %2423 = vmatpush.msra.mxu0 0.0
      %2424 = vmatpush.msra.mxu0 0.0
      %2425 = vmatpush.msra.mxu0 0.0
      %2426 = vmatpush.msra.mxu0 0.0
      %2427 = vmatpush.msra.mxu0 0.0
      %2428 = vmatpush.msra.mxu0 0.0
      %2429 = vmatpush.msra.mxu0 0.0
      %2430 = vmatpush.msra.mxu0 0.0
      %2431 = vmatpush.msra.mxu0 0.0
      %2432 = vmatpush.msra.mxu0 0.0
      %2433 = vmatpush.msra.mxu0 0.0
      %2434 = vmatpush.msra.mxu0 0.0
      %2435 = vmatpush.msra.mxu0 %v2418
      %2436 = vmatmul.f32.gmra.mxu0 %v2356
      %v2437 = vpop.f32.mrf.mxu0
      %v2438 = vadd.f32 0.0, %v2437
      %2439 = vdwg.mxu0
      %2440 = vst [vmem:[#allocation1] ss:$2 sm:$0xff] %v1850
      %v2441 = vld.sshfl [vmem:[#allocation1] sm:$0xff pattern:$0x75316420]
      %v2442 = vld.sshfl [vmem:[#allocation1 + $0x8] sm:$0xff pattern:$0x75316420]
      %2443 = vrot.lane.b32.xlu0 %v2441, 126
      %v2444 = vpop.permute.xlu0 %2443
      %2445 = vrot.lane.b32.xlu0 %v2442, 126
      %v2446 = vpop.permute.xlu0 %2445
      %v2447 = vsel %vm833, %v2444, %v2446
      %v2448 = vsel %vm301, %v2447, 0
      %2450 = vmatpush.msra.mxu0 0.0
      %2451 = vmatpush.msra.mxu0 0.0
      %2452 = vmatpush.msra.mxu0 0.0
      %2453 = vmatpush.msra.mxu0 0.0
      %2454 = vmatpush.msra.mxu0 0.0
      %2455 = vmatpush.msra.mxu0 0.0
      %2456 = vmatpush.msra.mxu0 0.0
      %2457 = vmatpush.msra.mxu0 0.0
      %2458 = vmatpush.msra.mxu0 0.0
      %2459 = vmatpush.msra.mxu0 0.0
      %2460 = vmatpush.msra.mxu0 0.0
      %2461 = vmatpush.msra.mxu0 0.0
      %2462 = vmatpush.msra.mxu0 0.0
      %2463 = vmatpush.msra.mxu0 0.0
      %2464 = vmatpush.msra.mxu0 0.0
      %2465 = vmatpush.msra.mxu0 %v2448
      %2466 = vmatmul.f32.gmra.mxu0 %v2356
      %v2467 = vpop.f32.mrf.mxu0
      %v2468 = vadd.f32 0.0, %v2467
      %2469 = vdwg.mxu0
      %2470 = vst [vmem:[#allocation1] ss:$2 sm:$0xff] %v1851
      %v2471 = vld.sshfl [vmem:[#allocation1] sm:$0xff pattern:$0x75316420]
      %v2472 = vld.sshfl [vmem:[#allocation1 + $0x8] sm:$0xff pattern:$0x75316420]
      %2473 = vrot.lane.b32.xlu0 %v2471, 126
      %v2474 = vpop.permute.xlu0 %2473
      %2475 = vrot.lane.b32.xlu0 %v2472, 126
      %v2476 = vpop.permute.xlu0 %2475
      %v2477 = vsel %vm833, %v2474, %v2476
      %v2478 = vsel %vm301, %v2477, 0
      %2480 = vmatpush.msra.mxu0 0.0
      %2481 = vmatpush.msra.mxu0 0.0
      %2482 = vmatpush.msra.mxu0 0.0
      %2483 = vmatpush.msra.mxu0 0.0
      %2484 = vmatpush.msra.mxu0 0.0
      %2485 = vmatpush.msra.mxu0 0.0
      %2486 = vmatpush.msra.mxu0 0.0
      %2487 = vmatpush.msra.mxu0 0.0
      %2488 = vmatpush.msra.mxu0 0.0
      %2489 = vmatpush.msra.mxu0 0.0
      %2490 = vmatpush.msra.mxu0 0.0
      %2491 = vmatpush.msra.mxu0 0.0
      %2492 = vmatpush.msra.mxu0 0.0
      %2493 = vmatpush.msra.mxu0 0.0
      %2494 = vmatpush.msra.mxu0 0.0
      %2495 = vmatpush.msra.mxu0 %v2478
      %2496 = vmatmul.f32.gmra.mxu0 %v2356
      %v2497 = vpop.f32.mrf.mxu0
      %v2498 = vadd.f32 0.0, %v2497
      %2499 = vdwg.mxu0
      %2500 = vst [vmem:[#allocation1] ss:$2 sm:$0xff] %v1852
      %v2501 = vld.sshfl [vmem:[#allocation1] sm:$0xff pattern:$0x75316420]
      %v2502 = vld.sshfl [vmem:[#allocation1 + $0x8] sm:$0xff pattern:$0x75316420]
      %2503 = vrot.lane.b32.xlu0 %v2501, 126
      %v2504 = vpop.permute.xlu0 %2503
      %2505 = vrot.lane.b32.xlu0 %v2502, 126
      %v2506 = vpop.permute.xlu0 %2505
      %v2507 = vsel %vm833, %v2504, %v2506
      %v2508 = vsel %vm301, %v2507, 0
      %2510 = vmatpush.msra.mxu0 0.0
      %2511 = vmatpush.msra.mxu0 0.0
      %2512 = vmatpush.msra.mxu0 0.0
      %2513 = vmatpush.msra.mxu0 0.0
      %2514 = vmatpush.msra.mxu0 0.0
      %2515 = vmatpush.msra.mxu0 0.0
      %2516 = vmatpush.msra.mxu0 0.0
      %2517 = vmatpush.msra.mxu0 0.0
      %2518 = vmatpush.msra.mxu0 0.0
      %2519 = vmatpush.msra.mxu0 0.0
      %2520 = vmatpush.msra.mxu0 0.0
      %2521 = vmatpush.msra.mxu0 0.0
      %2522 = vmatpush.msra.mxu0 0.0
      %2523 = vmatpush.msra.mxu0 0.0
      %2524 = vmatpush.msra.mxu0 0.0
      %2525 = vmatpush.msra.mxu0 %v2508
      %2526 = vmatmul.f32.gmra.mxu0 %v2356
      %v2527 = vpop.f32.mrf.mxu0
      %v2528 = vadd.f32 0.0, %v2527
      %2529 = vdwg.mxu0
      %2530 = vst [vmem:[#allocation1] ss:$2 sm:$0xff] %v1853
      %v2531 = vld.sshfl [vmem:[#allocation1] sm:$0xff pattern:$0x75316420]
      %v2532 = vld.sshfl [vmem:[#allocation1 + $0x8] sm:$0xff pattern:$0x75316420]
      %2533 = vrot.lane.b32.xlu0 %v2531, 126
      %v2534 = vpop.permute.xlu0 %2533
      %2535 = vrot.lane.b32.xlu0 %v2532, 126
      %v2536 = vpop.permute.xlu0 %2535
      %v2537 = vsel %vm833, %v2534, %v2536
      %v2538 = vsel %vm301, %v2537, 0
      %2540 = vmatpush.msra.mxu0 0.0
      %2541 = vmatpush.msra.mxu0 0.0
      %2542 = vmatpush.msra.mxu0 0.0
      %2543 = vmatpush.msra.mxu0 0.0
      %2544 = vmatpush.msra.mxu0 0.0
      %2545 = vmatpush.msra.mxu0 0.0
      %2546 = vmatpush.msra.mxu0 0.0
      %2547 = vmatpush.msra.mxu0 0.0
      %2548 = vmatpush.msra.mxu0 0.0
      %2549 = vmatpush.msra.mxu0 0.0
      %2550 = vmatpush.msra.mxu0 0.0
      %2551 = vmatpush.msra.mxu0 0.0
      %2552 = vmatpush.msra.mxu0 0.0
      %2553 = vmatpush.msra.mxu0 0.0
      %2554 = vmatpush.msra.mxu0 0.0
      %2555 = vmatpush.msra.mxu0 %v2538
      %2556 = vmatmul.f32.gmra.mxu0 %v2356
      %v2557 = vpop.f32.mrf.mxu0
      %v2558 = vadd.f32 0.0, %v2557
      %2559 = vdwg.mxu0
      %2560 = vst [vmem:[#allocation1] ss:$2 sm:$0xff] %v1854
      %v2561 = vld.sshfl [vmem:[#allocation1] sm:$0xff pattern:$0x75316420]
      %v2562 = vld.sshfl [vmem:[#allocation1 + $0x8] sm:$0xff pattern:$0x75316420]
      %2563 = vrot.lane.b32.xlu0 %v2561, 126
      %v2564 = vpop.permute.xlu0 %2563
      %2565 = vrot.lane.b32.xlu0 %v2562, 126
      %v2566 = vpop.permute.xlu0 %2565
      %v2567 = vsel %vm833, %v2564, %v2566
      %v2568 = vsel %vm301, %v2567, 0
      %2570 = vmatpush.msra.mxu0 0.0
      %2571 = vmatpush.msra.mxu0 0.0
      %2572 = vmatpush.msra.mxu0 0.0
      %2573 = vmatpush.msra.mxu0 0.0
      %2574 = vmatpush.msra.mxu0 0.0
      %2575 = vmatpush.msra.mxu0 0.0
      %2576 = vmatpush.msra.mxu0 0.0
      %2577 = vmatpush.msra.mxu0 0.0
      %2578 = vmatpush.msra.mxu0 0.0
      %2579 = vmatpush.msra.mxu0 0.0
      %2580 = vmatpush.msra.mxu0 0.0
      %2581 = vmatpush.msra.mxu0 0.0
      %2582 = vmatpush.msra.mxu0 0.0
      %2583 = vmatpush.msra.mxu0 0.0
      %2584 = vmatpush.msra.mxu0 0.0
      %2585 = vmatpush.msra.mxu0 %v2568
      %2586 = vmatmul.f32.gmra.mxu0 %v2356
      %v2587 = vpop.f32.mrf.mxu0
      %v2588 = vadd.f32 0.0, %v2587
      %2589 = vdwg.mxu0
      %v2590 = vadd.f32 %v2339, %v2378
      %v2591 = vadd.f32 %v2340, %v2408
      %v2592 = vadd.f32 %v2341, %v2438
      %v2593 = vadd.f32 %v2342, %v2468
      %v2594 = vadd.f32 %v2343, %v2498
      %v2595 = vadd.f32 %v2344, %v2528
      %v2596 = vadd.f32 %v2345, %v2558
      %v2597 = vadd.f32 %v2346, %v2588
      %2598 = vst [vmem:[#allocation3] sm:$0xff] %v2590
      %2599 = vst [vmem:[#allocation3 + $0x8] sm:$0xff] %v2591
      %2600 = vst [vmem:[#allocation3 + $0x10] sm:$0xff] %v2592
      %2601 = vst [vmem:[#allocation3 + $0x18] sm:$0xff] %v2593
      %2602 = vst [vmem:[#allocation3 + $0x20] sm:$0xff] %v2594
      %2603 = vst [vmem:[#allocation3 + $0x28] sm:$0xff] %v2595
      %2604 = vst [vmem:[#allocation3 + $0x30] sm:$0xff] %v2596
      %2605 = vst [vmem:[#allocation3 + $0x38] sm:$0xff] %v2597
      %v2606 = vld [vmem:[#allocation3] sm:$0xff]
      %v2607 = vld [vmem:[#allocation3 + $0x8] sm:$0xff]
      %v2608 = vld [vmem:[#allocation3 + $0x10] sm:$0xff]
      %v2609 = vld [vmem:[#allocation3 + $0x18] sm:$0xff]
      %v2610 = vld [vmem:[#allocation3 + $0x20] sm:$0xff]
      %v2611 = vld [vmem:[#allocation3 + $0x28] sm:$0xff]
      %v2612 = vld [vmem:[#allocation3 + $0x30] sm:$0xff]
      %v2613 = vld [vmem:[#allocation3 + $0x38] sm:$0xff]
      %v2614 = vld [vmem:[%s3] sm:$0xff]
      %2616 = vset.pattern.permute.xlu0 0
      %2617 = vperm.xlu0 %2616, %v2614
      %v2618 = vpop.permute.xlu0 %2617
      %v2620 = vadd.f32 %v2606, %v2618
      %v2621 = vadd.f32 %v2607, %v2618
      %v2622 = vadd.f32 %v2608, %v2618
      %v2623 = vadd.f32 %v2609, %v2618
      %v2624 = vadd.f32 %v2610, %v2618
      %v2625 = vadd.f32 %v2611, %v2618
      %v2626 = vadd.f32 %v2612, %v2618
      %v2627 = vadd.f32 %v2613, %v2618
      %2628 = vst [vmem:[%s291] sm:$0xff] %v2620
      %2629 = vst [vmem:[%s291 + $0x8] sm:$0xff] %v2621
      %2630 = vst [vmem:[%s291 + $0x10] sm:$0xff] %v2622
      %2631 = vst [vmem:[%s291 + $0x18] sm:$0xff] %v2623
      %2632 = vst [vmem:[%s291 + $0x20] sm:$0xff] %v2624
      %2633 = vst [vmem:[%s291 + $0x28] sm:$0xff] %v2625
      %2634 = vst [vmem:[%s291 + $0x30] sm:$0xff] %v2626
      %2635 = vst [vmem:[%s291 + $0x38] sm:$0xff] %v2627
      %s2636 = smul.u32 8, %s20
      %p2637 = scmp.lt.s32.totalorder %s19, 1
      %s2638 = scalar_select %p2637, %s19, 1
      %p2639 = scmp.lt.s32.totalorder %s2636, 31
      %s2640 = scalar_select %p2639, %s2636, 31
      %s2641 = smul.addr %s2638, 32
      %s2642 = sadd.s32 %s2640, %s2641
      %s2643 = smul.addr %s2642, 8
      %s2644 = scalar_lea.vmem %s4, %s2643
      // Predicated region
      $region37: #{upsample_conv_layer_forward.1} parent=35 // pred_check
        %p2645 = pneg %p149
      $region38: #{upsample_conv_layer_forward.1} parent=35 // pred_check_branch
        %2647 = sbr.rel (%p2645) target = $region40
      $region39: #{upsample_conv_layer_forward.1} parent=35 // pred_region
        %s2648 = smul.u32 8, %s20
      $region40: #{upsample_conv_layer_forward.1} parent=35 // pred_fallthru
        _
    $region36: #{upsample_conv_layer_forward.1} parent=5 // pred_fallthru
      _
    %p2649 = scmp.le.s32.totalorder 2, %s10
    // Predicated region
    $region41: #{upsample_conv_layer_forward.1} parent=5 // pred_check
      %p2650 = pneg %p2649
    $region42: #{upsample_conv_layer_forward.1} parent=5 // pred_check_branch
      %2652 = sbr.rel (%p2650) target = $region44
    $region43: #{upsample_conv_layer_forward.1} parent=5 // pred_region
      %s2653 = ssub.s32 %s10, 2
      // Predicated region
      $region45: #{upsample_conv_layer_forward.1} parent=43 // pred_check
        %p2654 = pneg %p155
      $region46: #{upsample_conv_layer_forward.1} parent=43 // pred_check_branch
        %2656 = sbr.rel (%p2654) target = $region48
      $region47: #{upsample_conv_layer_forward.1} parent=43 // pred_region
        %s2657 = smul.u32 8, %s22
        %p2658 = scmp.lt.s32.totalorder %s21, 1
        %s2659 = scalar_select %p2658, %s21, 1
        %p2660 = scmp.lt.s32.totalorder %s2657, 31
        %s2661 = scalar_select %p2660, %s2657, 31
        %s2662 = smul.addr %s2659, 32
        %s2663 = sadd.s32 %s2661, %s2662
        %s2664 = smul.addr %s2663, 8
        %s2665 = scalar_lea.vmem %s4, %s2664
      $region48: #{upsample_conv_layer_forward.1} parent=43 // pred_fallthru
        _
    $region44: #{upsample_conv_layer_forward.1} parent=5 // pred_fallthru
      _
  $region6: #{upsample_conv_layer_forward.1} parent=0 // loop_footer
    %s14 = sadd.s32 1, %s10
  $region7: #{upsample_conv_layer_forward.1} parent=0 // loop_footer_branch
    %9 = sbr.rel target = $region3
  $region8: #{upsample_conv_layer_forward.1} parent=0 // loop_exit
    _

</llo_original>
